<compile_context>
chip_gen: v5e
topology: v5e:2x2
jax: 0.10.0
libtpu: 0.0.40
codegen_flags: <defaults>
</compile_context>

<pallas_src>
import functools

import jax
import jax.numpy as jnp
from jax.experimental import pallas as pl
from jax.experimental.pallas import tpu as pltpu


# ----------------------------- Pallas kernel -------------------------------

def _convlstm_kernel(w_ref, b_ref, p_ref, c_ref, wci_ref, wcf_ref, wco_ref,
                     ch_ref, cc_ref):
    C = c_ref.shape[0]
    # Single fused MXU matmul: (4C, K) @ (K, tm) -> f32 (4C, tm).
    g = jnp.dot(w_ref[...], p_ref[...], preferred_element_type=jnp.float32)
    g = g + b_ref[...]                       # (4C, 1) broadcast along lanes
    c = c_ref[...]

    # Gate order: i, f, c(g), o.  Slices are along sublanes at multiples of 8.
    xi = g[0 * C:1 * C, :]
    xf = g[1 * C:2 * C, :]
    xg = g[2 * C:3 * C, :]
    xo = g[3 * C:4 * C, :]

    ci = jax.nn.sigmoid(xi + c * wci_ref[...])
    cf = jax.nn.sigmoid(xf + c * wcf_ref[...])
    cc = cf * c + ci * jnp.tanh(xg)
    co = jax.nn.sigmoid(xo + cc * wco_ref[...])
    ch = co * jnp.tanh(cc)

    ch_ref[...] = ch.astype(ch_ref.dtype)
    cc_ref[...] = cc.astype(cc_ref.dtype)


# ------------------------------- JAX glue -----------------------------------

def _im2col_t(a, k, pad):
    """a: (N, C, H, W) -> (C*k*k, N*H*W).  K rows ordered (c, dy, dx) to match
    PyTorch conv weight (Cout, Cin, kh, kw).reshape(Cout, -1); columns ordered
    (n, h, w)."""
    N, C, H, W = a.shape
    ap = jnp.pad(a, ((0, 0), (0, 0), (pad, pad), (pad, pad)))
    cols = []
    for dy in range(k):
        for dx in range(k):
            cols.append(ap[:, :, dy:dy + H, dx:dx + W])        # (N, C, H, W)
    col = jnp.stack(cols, axis=2)                              # (N, C, k*k, H, W)
    col = col.transpose(1, 2, 0, 3, 4)                         # (C, k*k, N, H, W)
    return col.reshape(C * k * k, N * H * W)


def _choose_tm(M, HW, target):
    """Largest 128-multiple tm <= target dividing M, compatible with reusing
    the (Chid, H*W) peephole arrays, preferring >= 2 grid steps."""
    cands = []
    t = 128
    while t <= min(target, M):
        if M % t == 0 and (HW % t == 0 or t % HW == 0):
            cands.append(t)
        t += 128
    if not cands:
        raise ValueError(f"no valid column tile for M={M}, H*W={HW}")
    multi = [t for t in cands if M // t >= 2]
    return max(multi) if multi else max(cands)


def conv_lstm_cell_forward(params, x, h, c, *, kernel_size,
                           compute_dtype=jnp.bfloat16, tm_target=1024):
    """ConvLSTMCell.forward. x: (N, Cin, H, W); h, c: (N, Chid, H, W) NCHW."""
    N, Cin, H, W = x.shape
    Chid = h.shape[1]
    k = kernel_size
    pad = (k - 1) // 2
    M = N * H * W
    HW = H * W
    assert M % 128 == 0, "N*H*W must be a multiple of 128"
    tm = _choose_tm(M, HW, tm_target)

    # Fused, transposed im2col patches: (K, M), K = (Cin + Chid) * k * k.
    xp = _im2col_t(x, k, pad)
    hp = _im2col_t(h, k, pad)
    p_all = jnp.concatenate([xp, hp], axis=0)
    K = p_all.shape[0]
    Kp = ((K + 15) // 16) * 16               # sublane-pack friendly (f32 & bf16)
    if Kp != K:
        p_all = jnp.pad(p_all, ((0, Kp - K), (0, 0)))
    p_all = p_all.astype(compute_dtype)

    # Fused gate weights: (4*Chid, Kp), gate rows ordered i, f, c, o.
    def pk(w):                                # (Chid, Cin_, k, k) -> (Chid, Cin_*k*k)
        return w.reshape(Chid, -1)

    wx = jnp.concatenate([pk(params["Wxi_w"]), pk(params["Wxf_w"]),
                          pk(params["Wxc_w"]), pk(params["Wxo_w"])], axis=0)
    wh = jnp.concatenate([pk(params["Whi_w"]), pk(params["Whf_w"]),
                          pk(params["Whc_w"]), pk(params["Who_w"])], axis=0)
    w_all = jnp.concatenate([wx, wh], axis=1)                  # (4C, K)
    if Kp != K:
        w_all = jnp.pad(w_all, ((0, 0), (0, Kp - K)))
    w_all = w_all.astype(compute_dtype)

    b_all = jnp.concatenate([params["Wxi_b"], params["Wxf_b"],
                             params["Wxc_b"], params["Wxo_b"]],
                            axis=0).reshape(4 * Chid, 1).astype(jnp.float32)

    # Features-first state: (Chid, M), columns ordered (n, h, w).
    c_t = c.transpose(1, 0, 2, 3).reshape(Chid, M).astype(jnp.float32)

    # Peephole weights stay (Chid, H*W) -- no N x duplication in HBM.
    def pee(w):
        return w.reshape(Chid, HW).astype(jnp.float32)

    wci_t, wcf_t, wco_t = pee(params["Wci"]), pee(params["Wcf"]), pee(params["Wco"])
    if HW % tm == 0:
        n_pee = HW // tm
        pee_map = (lambda i: (0, 0)) if n_pee == 1 else (lambda i: (0, i % n_pee))
    else:                                    # tm spans >= 1 whole image(s)
        q = tm // HW
        wci_t = jnp.tile(wci_t, (1, q))
        wcf_t = jnp.tile(wcf_t, (1, q))
        wco_t = jnp.tile(wco_t, (1, q))
        pee_map = lambda i: (0, 0)

    grid = (M // tm,)
    col_spec = pl.BlockSpec((Chid, tm), lambda i: (0, i))
    pee_spec = pl.BlockSpec((Chid, tm), pee_map)

    ch_t, cc_t = pl.pallas_call(
        _convlstm_kernel,
        out_shape=(jax.ShapeDtypeStruct((Chid, M), jnp.float32),
                   jax.ShapeDtypeStruct((Chid, M), jnp.float32)),
        grid_spec=pltpu.PrefetchScalarGridSpec(
            num_scalar_prefetch=0,
            grid=grid,
            in_specs=[
                pl.BlockSpec((4 * Chid, Kp), lambda i: (0, 0)),   # fused weights
                pl.BlockSpec((4 * Chid, 1), lambda i: (0, 0)),    # bias
                pl.BlockSpec((Kp, tm), lambda i: (0, i)),         # fused patches
                col_spec,                                         # c
                pee_spec, pee_spec, pee_spec,                     # Wci, Wcf, Wco
            ],
            out_specs=[col_spec, col_spec],
        ),
        compiler_params=pltpu.CompilerParams(
            dimension_semantics=("parallel",),
            vmem_limit_bytes=32 * 1024 * 1024),
    )(w_all, b_all, p_all, c_t, wci_t, wcf_t, wco_t)

    def to_nchw(a):                          # (Chid, M) -> (N, Chid, H, W)
        return a.reshape(Chid, N, H, W).transpose(1, 0, 2, 3)

    return to_nchw(ch_t), to_nchw(cc_t)


# --------------------------- pure-JAX reference ------------------------------

def _conv2d_nchw(x, w, b=None, *, pad):
    y = jax.lax.conv_general_dilated(
        x, w, window_strides=(1, 1), padding=[(pad, pad), (pad, pad)],
        dimension_numbers=("NCHW", "OIHW", "NCHW"),
        precision=jax.lax.Precision.HIGHEST)
    if b is not None:
        y = y + b[None, :, None, None]
    return y


def conv_lstm_cell_reference(params, x, h, c, *, kernel_size):
    pad = (kernel_size - 1) // 2
    conv = functools.partial(_conv2d_nchw, pad=pad)
    ci = jax.nn.sigmoid(conv(x, params["Wxi_w"], params["Wxi_b"])
                        + conv(h, params["Whi_w"]) + c * params["Wci"])
    cf = jax.nn.sigmoid(conv(x, params["Wxf_w"], params["Wxf_b"])
                        + conv(h, params["Whf_w"]) + c * params["Wcf"])
    cc = cf * c + ci * jnp.tanh(conv(x, params["Wxc_w"], params["Wxc_b"])
                                + conv(h, params["Whc_w"]))
    co = jax.nn.sigmoid(conv(x, params["Wxo_w"], params["Wxo_b"])
                        + conv(h, params["Who_w"]) + cc * params["Wco"])
    ch = co * jnp.tanh(cc)
    return ch, cc


# --------------------------------- main --------------------------------------

if __name__ == "__main__":
    input_channels, hidden_channels, kernel_size = 4, 32, 3
    N, H, W = 2, 16, 16

    key = jax.random.PRNGKey(0)
    keys = jax.random.split(key, 16)

    def conv_w(k, cout, cin):
        fan_in = cin * kernel_size * kernel_size
        bound = 1.0 / jnp.sqrt(fan_in)
        return jax.random.uniform(
            k, (cout, cin, kernel_size, kernel_size),
            minval=-bound, maxval=bound, dtype=jnp.float32)

    def conv_b(k, cout, cin):
        fan_in = cin * kernel_size * kernel_size
        bound = 1.0 / jnp.sqrt(fan_in)
        return jax.random.uniform(k, (cout,), minval=-bound, maxval=bound,
                                  dtype=jnp.float32)

    params = {
        "Wxi_w": conv_w(keys[0], hidden_channels, input_channels),
        "Wxi_b": conv_b(keys[1], hidden_channels, input_channels),
        "Wxf_w": conv_w(keys[2], hidden_channels, input_channels),
        "Wxf_b": conv_b(keys[3], hidden_channels, input_channels),
        "Wxc_w": conv_w(keys[4], hidden_channels, input_channels),
        "Wxc_b": conv_b(keys[5], hidden_channels, input_channels),
        "Wxo_w": conv_w(keys[6], hidden_channels, input_channels),
        "Wxo_b": conv_b(keys[7], hidden_channels, input_channels),
        "Whi_w": conv_w(keys[8], hidden_channels, hidden_channels),
        "Whf_w": conv_w(keys[9], hidden_channels, hidden_channels),
        "Whc_w": conv_w(keys[10], hidden_channels, hidden_channels),
        "Who_w": conv_w(keys[11], hidden_channels, hidden_channels),
        # init_hidden() zero-initializes the peepholes; use small deterministic
        # values so the peephole path is exercised numerically.
        "Wci": 0.1 * jax.random.normal(keys[12], (1, hidden_channels, H, W),
                                       dtype=jnp.float32),
        "Wcf": 0.1 * jax.random.normal(keys[13], (1, hidden_channels, H, W),
                                       dtype=jnp.float32),
        "Wco": 0.1 * jax.random.normal(keys[14], (1, hidden_channels, H, W),
                                       dtype=jnp.float32),
    }

    dkeys = jax.random.split(keys[15], 3)
    x = jax.random.normal(dkeys[0], (N, input_channels, H, W), dtype=jnp.float32)
    h = jax.random.normal(dkeys[1], (N, hidden_channels, H, W), dtype=jnp.float32)
    c = jax.random.normal(dkeys[2], (N, hidden_channels, H, W), dtype=jnp.float32)

    ch_ref, cc_ref = conv_lstm_cell_reference(params, x, h, c,
                                              kernel_size=kernel_size)

    # f32 patches/weights: validates the kernel math tightly.
    ch32, cc32 = conv_lstm_cell_forward(params, x, h, c,
                                        kernel_size=kernel_size,
                                        compute_dtype=jnp.float32)
    ch32, cc32 = jax.block_until_ready((ch32, cc32))
    assert jnp.allclose(ch32, ch_ref, atol=2e-3, rtol=2e-3), "ch mismatch (f32)"
    assert jnp.allclose(cc32, cc_ref, atol=2e-3, rtol=2e-3), "cc mismatch (f32)"

    # bf16 patches/weights (the optimized path): f32 accumulate + gate math;
    # tolerance reflects bf16 input quantization only.
    chbf, ccbf = conv_lstm_cell_forward(params, x, h, c,
                                        kernel_size=kernel_size,
                                        compute_dtype=jnp.bfloat16)
    chbf, ccbf = jax.block_until_ready((chbf, ccbf))
    assert jnp.allclose(chbf, ch_ref, atol=2e-2, rtol=2e-2), "ch mismatch (bf16)"
    assert jnp.allclose(ccbf, cc_ref, atol=2e-2, rtol=2e-2), "cc mismatch (bf16)"

    print("KERNEL_OK")
</pallas_src>

<mosaic_0001>
module attributes {stable_mosaic.version = 11 : i64} {
  func.func @_convlstm_kernel(%arg0: i32, %arg1: memref<128x336xf32, #tpu.memory_space<vmem>>, %arg2: memref<128x1xf32, #tpu.memory_space<vmem>>, %arg3: memref<336x256xf32, #tpu.memory_space<vmem>>, %arg4: memref<32x256xf32, #tpu.memory_space<vmem>>, %arg5: memref<32x256xf32, #tpu.memory_space<vmem>>, %arg6: memref<32x256xf32, #tpu.memory_space<vmem>>, %arg7: memref<32x256xf32, #tpu.memory_space<vmem>>, %arg8: memref<32x256xf32, #tpu.memory_space<vmem>>, %arg9: memref<32x256xf32, #tpu.memory_space<vmem>>) attributes {dimension_semantics = [#tpu.dimension_semantics<parallel>], iteration_bounds = array<i64: 2>, scalar_prefetch = 0 : i64, scratch_operands = 0 : i64, tpu.core_type = #tpu.core_type<tc>, window_params = [{pipeline_mode = #tpu.pipeline_mode<synchronous>, transform_indices = @transform_0, window_bounds = array<i64: 128, 336>}, {pipeline_mode = #tpu.pipeline_mode<synchronous>, transform_indices = @transform_1, window_bounds = array<i64: 128, 1>}, {transform_indices = @transform_2, window_bounds = array<i64: 336, 256>}, {transform_indices = @transform_3, window_bounds = array<i64: 32, 256>}, {pipeline_mode = #tpu.pipeline_mode<synchronous>, transform_indices = @transform_4, window_bounds = array<i64: 32, 256>}, {pipeline_mode = #tpu.pipeline_mode<synchronous>, transform_indices = @transform_5, window_bounds = array<i64: 32, 256>}, {pipeline_mode = #tpu.pipeline_mode<synchronous>, transform_indices = @transform_6, window_bounds = array<i64: 32, 256>}, {transform_indices = @transform_7, window_bounds = array<i64: 32, 256>}, {transform_indices = @transform_8, window_bounds = array<i64: 32, 256>}]} {
    %c0 = arith.constant 0 : index
    %c0_0 = arith.constant 0 : index
    %0 = vector.load %arg1[%c0, %c0_0] : memref<128x336xf32, #tpu.memory_space<vmem>>, vector<128x336xf32>
    %c0_1 = arith.constant 0 : index
    %c0_2 = arith.constant 0 : index
    %1 = vector.load %arg3[%c0_1, %c0_2] : memref<336x256xf32, #tpu.memory_space<vmem>>, vector<336x256xf32>
    %cst = arith.constant dense<0.000000e+00> : vector<128x256xf32>
    %2 = tpu.matmul %0, %1, %cst {dimension_numbers = #tpu.dot_dimension_numbers<[1], [0], [0], [1], [0, 0, 1, 1], [], []>} : vector<128x336xf32>, vector<336x256xf32>, vector<128x256xf32> -> vector<128x256xf32>
    %c0_3 = arith.constant 0 : index
    %c0_4 = arith.constant 0 : index
    %3 = vector.load %arg2[%c0_3, %c0_4] : memref<128x1xf32, #tpu.memory_space<vmem>>, vector<128x1xf32>
    %4 = vector.broadcast %3 : vector<128x1xf32> to vector<128x256xf32>
    %5 = arith.addf %2, %4 : vector<128x256xf32>
    %c0_5 = arith.constant 0 : index
    %c0_6 = arith.constant 0 : index
    %6 = vector.load %arg4[%c0_5, %c0_6] : memref<32x256xf32, #tpu.memory_space<vmem>>, vector<32x256xf32>
    %7 = vector.extract_strided_slice %5 {offsets = [0, 0], sizes = [32, 256], strides = [1, 1]} : vector<128x256xf32> to vector<32x256xf32>
    %8 = vector.extract_strided_slice %5 {offsets = [32, 0], sizes = [32, 256], strides = [1, 1]} : vector<128x256xf32> to vector<32x256xf32>
    %9 = vector.extract_strided_slice %5 {offsets = [64, 0], sizes = [32, 256], strides = [1, 1]} : vector<128x256xf32> to vector<32x256xf32>
    %10 = vector.extract_strided_slice %5 {offsets = [96, 0], sizes = [32, 256], strides = [1, 1]} : vector<128x256xf32> to vector<32x256xf32>
    %c0_7 = arith.constant 0 : index
    %c0_8 = arith.constant 0 : index
    %11 = vector.load %arg5[%c0_7, %c0_8] : memref<32x256xf32, #tpu.memory_space<vmem>>, vector<32x256xf32>
    %12 = arith.mulf %6, %11 : vector<32x256xf32>
    %13 = arith.addf %7, %12 : vector<32x256xf32>
    %14 = arith.negf %13 : vector<32x256xf32>
    %15 = math.exp %14 : vector<32x256xf32>
    %cst_9 = arith.constant 1.000000e+00 : f32
    %16 = vector.broadcast %cst_9 : f32 to vector<32x256xf32>
    %17 = arith.addf %16, %15 : vector<32x256xf32>
    %18 = arith.divf %16, %17 : vector<32x256xf32>
    %c0_10 = arith.constant 0 : index
    %c0_11 = arith.constant 0 : index
    %19 = vector.load %arg6[%c0_10, %c0_11] : memref<32x256xf32, #tpu.memory_space<vmem>>, vector<32x256xf32>
    %20 = arith.mulf %6, %19 : vector<32x256xf32>
    %21 = arith.addf %8, %20 : vector<32x256xf32>
    %22 = arith.negf %21 : vector<32x256xf32>
    %23 = math.exp %22 : vector<32x256xf32>
    %cst_12 = arith.constant 1.000000e+00 : f32
    %24 = vector.broadcast %cst_12 : f32 to vector<32x256xf32>
    %25 = arith.addf %24, %23 : vector<32x256xf32>
    %26 = arith.divf %24, %25 : vector<32x256xf32>
    %27 = arith.mulf %26, %6 : vector<32x256xf32>
    %28 = math.tanh %9 : vector<32x256xf32>
    %29 = arith.mulf %18, %28 : vector<32x256xf32>
    %30 = arith.addf %27, %29 : vector<32x256xf32>
    %c0_13 = arith.constant 0 : index
    %c0_14 = arith.constant 0 : index
    %31 = vector.load %arg7[%c0_13, %c0_14] : memref<32x256xf32, #tpu.memory_space<vmem>>, vector<32x256xf32>
    %32 = arith.mulf %30, %31 : vector<32x256xf32>
    %33 = arith.addf %10, %32 : vector<32x256xf32>
    %34 = arith.negf %33 : vector<32x256xf32>
    %35 = math.exp %34 : vector<32x256xf32>
    %cst_15 = arith.constant 1.000000e+00 : f32
    %36 = vector.broadcast %cst_15 : f32 to vector<32x256xf32>
    %37 = arith.addf %36, %35 : vector<32x256xf32>
    %38 = arith.divf %36, %37 : vector<32x256xf32>
    %39 = math.tanh %30 : vector<32x256xf32>
    %40 = arith.mulf %38, %39 : vector<32x256xf32>
    %c0_16 = arith.constant 0 : index
    %c0_17 = arith.constant 0 : index
    %41 = vector.load %arg8[%c0_16, %c0_17] : memref<32x256xf32, #tpu.memory_space<vmem>>, vector<32x256xf32>
    tpu.vector_store %arg8[%c0_16, %c0_17], %40 {strides = array<i32>} : memref<32x256xf32, #tpu.memory_space<vmem>>, vector<32x256xf32>,
    %c0_18 = arith.constant 0 : index
    %c0_19 = arith.constant 0 : index
    %42 = vector.load %arg9[%c0_18, %c0_19] : memref<32x256xf32, #tpu.memory_space<vmem>>, vector<32x256xf32>
    tpu.vector_store %arg9[%c0_18, %c0_19], %30 {strides = array<i32>} : memref<32x256xf32, #tpu.memory_space<vmem>>, vector<32x256xf32>,
    return
  }
  func.func @transform_0(%arg0: i32) -> (i32, i32) {
    %c0_i32 = arith.constant 0 : i32
    %c0_i32_0 = arith.constant 0 : i32
    %c0_i32_1 = arith.constant 0 : i32
    return %c0_i32, %c0_i32_0 : i32, i32
  }
  func.func @transform_1(%arg0: i32) -> (i32, i32) {
    %c0_i32 = arith.constant 0 : i32
    %c0_i32_0 = arith.constant 0 : i32
    %c0_i32_1 = arith.constant 0 : i32
    return %c0_i32, %c0_i32_0 : i32, i32
  }
  func.func @transform_2(%arg0: i32) -> (i32, i32) {
    %c0_i32 = arith.constant 0 : i32
    %c0_i32_0 = arith.constant 0 : i32
    return %c0_i32, %arg0 : i32, i32
  }
  func.func @transform_3(%arg0: i32) -> (i32, i32) {
    %c0_i32 = arith.constant 0 : i32
    %c0_i32_0 = arith.constant 0 : i32
    return %c0_i32, %arg0 : i32, i32
  }
  func.func @transform_4(%arg0: i32) -> (i32, i32) {
    %c0_i32 = arith.constant 0 : i32
    %c0_i32_0 = arith.constant 0 : i32
    %c0_i32_1 = arith.constant 0 : i32
    return %c0_i32, %c0_i32_0 : i32, i32
  }
  func.func @transform_5(%arg0: i32) -> (i32, i32) {
    %c0_i32 = arith.constant 0 : i32
    %c0_i32_0 = arith.constant 0 : i32
    %c0_i32_1 = arith.constant 0 : i32
    return %c0_i32, %c0_i32_0 : i32, i32
  }
  func.func @transform_6(%arg0: i32) -> (i32, i32) {
    %c0_i32 = arith.constant 0 : i32
    %c0_i32_0 = arith.constant 0 : i32
    %c0_i32_1 = arith.constant 0 : i32
    return %c0_i32, %c0_i32_0 : i32, i32
  }
  func.func @transform_7(%arg0: i32) -> (i32, i32) {
    %c0_i32 = arith.constant 0 : i32
    %c0_i32_0 = arith.constant 0 : i32
    return %c0_i32, %arg0 : i32, i32
  }
  func.func @transform_8(%arg0: i32) -> (i32, i32) {
    %c0_i32 = arith.constant 0 : i32
    %c0_i32_0 = arith.constant 0 : i32
    return %c0_i32, %arg0 : i32, i32
  }
}

</mosaic_0001>

<llo_original>
// kernel: tpu_custom_call.1
$region0: #{tpu_custom_call.1}
  #allocation0 [shape = 'u32[]', space=smem, size = 0x4, offset = 0x4, fixed_abs, tag = 'smem constant byte address 0x4 - core index']
  #allocation1 [shape = 'u32[72,128]{1,0:T(1,128)}', space=vmem, size = 0x9000, scoped, tag = 'internal scratch']
  %s0 = inlined_call_operand.vmem [shape: f32[128,336], index: 0, kind: input, shape index: {}]
  %s1 = inlined_call_operand.vmem [shape: f32[128,1], index: 1, kind: input, shape index: {}]
  %s2 = inlined_call_operand.hbm [shape: f32[336,512], index: 2, kind: input, shape index: {}]
  %s3 = inlined_call_operand.vmem [shape: f32[32,512], index: 3, kind: input, shape index: {}]
  %s4 = inlined_call_operand.vmem [shape: f32[32,256], index: 4, kind: input, shape index: {}]
  %s5 = inlined_call_operand.vmem [shape: f32[32,256], index: 5, kind: input, shape index: {}]
  %s6 = inlined_call_operand.vmem [shape: f32[32,256], index: 6, kind: input, shape index: {}]
  %s7 = inlined_call_operand.hbm [shape: f32[32,512], index: 7, kind: output, shape index: {0}]
  %s8 = inlined_call_operand.hbm [shape: f32[32,512], index: 8, kind: output, shape index: {1}]
  %9 = xla_tuple %s7, %s8
  %s10 = sld [smem:[#allocation0]]
  $region96: #{tpu_custom_call.1} parent=0
    _
  %s12 = ssub.s32 1, %s10
  %s13 = scalar_select 0, %s12, %s10
  $region1: #{tpu_custom_call.1} parent=0
    #allocation2 [shape = 'u8[688128]{0}', space=vmem, size = 0xa8000, scoped, tag = 'input window, operand 2']
    #allocation3 [shape = 's32[2]{0}', space=sflag, size = 0x8, scoped, tag = 'scoped memory for tpu_custom_call.1']
    #allocation4 [shape = 's32[2]{0}', space=sflag, size = 0x8, scoped, tag = 'scoped memory for tpu_custom_call.1']
    #allocation5 [shape = 'u8[65536]{0}', space=vmem, size = 0x10000, scoped, tag = 'input window, operand 3']
    #allocation6 [shape = 'u8[65536]{0}', space=vmem, size = 0x10000, scoped, tag = 'output window, operand 0']
    #allocation7 [shape = 'u8[65536]{0}', space=vmem, size = 0x10000, scoped, tag = 'output window, operand 1']
    #allocation8 [shape = 's32[2]{0}', space=sflag, size = 0x8, scoped, tag = 'scoped memory for tpu_custom_call.1']
    %14 = vsyncpa [#allocation3], 0
    %s15 = scalar_lea.sflag [#allocation3], 1
    %16 = vsyncpa %s15, 0
    %17 = vsyncpa [#allocation4], 0
    %s18 = scalar_lea.sflag [#allocation4], 1
    %19 = vsyncpa %s18, 0
    %20 = vsyncpa [#allocation8], 0
    %s21 = scalar_lea.sflag [#allocation8], 1
    %22 = vsyncpa %s21, 0
    loop: start=0, step=1, limit=4
    $region2: #{tpu_custom_call.1} parent=1 // loop_pre_header
      _
    $region3: #{tpu_custom_call.1} parent=1 // loop_header
      %s24 = sphi 0, %s28
      %p25 = scmp.ge.s32.totalorder %s24, 4
      %s32 = sphi 0, %s32
      %s34 = sphi 0, %s32
      %s35 = sphi 0, %s34
      %s49 = sphi 0, %s35
      %s53 = sphi 0, %s53
      %s55 = sphi 0, %s53
      %s56 = sphi 0, %s55
      %s70 = sphi 0, %s56
      %s76 = sphi 0, %s78
      %s79 = sphi 0, %s76
      %s80 = sphi 0, %s79
      %s96 = sphi 0, %s80
      %s102 = sphi 0, %s104
      %s105 = sphi 0, %s102
      %s106 = sphi 0, %s105
      %s122 = sphi 0, %s106
      %s126 = sphi 0, %s126
      %s128 = sphi 0, %s126
      %s129 = sphi 0, %s128
      %s143 = sphi 0, %s129
      %s147 = sphi 0, %s147
      %s149 = sphi 0, %s147
      %s150 = sphi 0, %s149
      %s164 = sphi 0, %s150
      %s168 = sphi 0, %s168
      %s170 = sphi 0, %s168
      %s171 = sphi 0, %s170
      %s185 = sphi 0, %s171
      %s191 = sphi 0, %s193
      %s194 = sphi 0, %s191
      %s195 = sphi 0, %s194
      %s211 = sphi 0, %s195
      %s217 = sphi 0, %s219
      %s220 = sphi 0, %s217
      %s221 = sphi 0, %s220
      %s237 = sphi 0, %s221
    $region4: #{tpu_custom_call.1} parent=1 // loop_header_branch
      %27 = sbr.rel (%p25) target = $region8
    $region5: #{tpu_custom_call.1} parent=1 // loop_body
      %s29 = ssub.s32 %s24, 1
      %s30 = ssub.s32 %s24, 2
      %s31 = sadd.s32 %s24, 1
      %s33 = sadd.s32 %s32, 1
      %p36 = scmp.eq.s32.totalorder %s24, 1
      %p37 = scmp.ne.s32.totalorder %s32, %s34
      %p38 = scmp.eq.s32.totalorder %s24, 0
      %p39 = por %p37, %p38
      %p40 = scmp.ne.s32.totalorder %s32, %s34
      %p41 = scmp.eq.s32.totalorder %s29, 1
      %p42 = por %p40, %p41
      %p43 = scmp.ne.s32.totalorder %s34, %s35
      %p44 = scmp.eq.s32.totalorder %s29, 0
      %p45 = por %p43, %p44
      %p46 = scmp.ne.s32.totalorder %s34, %s35
      %p47 = scmp.eq.s32.totalorder %s30, 1
      %p48 = por %p46, %p47
      %p50 = scmp.ne.s32.totalorder %s35, %s49
      %p51 = scmp.eq.s32.totalorder %s30, 0
      %p52 = por %p50, %p51
      %s54 = sadd.s32 %s53, 1
      %p57 = scmp.eq.s32.totalorder %s24, 1
      %p58 = scmp.ne.s32.totalorder %s53, %s55
      %p59 = scmp.eq.s32.totalorder %s24, 0
      %p60 = por %p58, %p59
      %p61 = scmp.ne.s32.totalorder %s53, %s55
      %p62 = scmp.eq.s32.totalorder %s29, 1
      %p63 = por %p61, %p62
      %p64 = scmp.ne.s32.totalorder %s55, %s56
      %p65 = scmp.eq.s32.totalorder %s29, 0
      %p66 = por %p64, %p65
      %p67 = scmp.ne.s32.totalorder %s55, %s56
      %p68 = scmp.eq.s32.totalorder %s30, 1
      %p69 = por %p67, %p68
      %p71 = scmp.ne.s32.totalorder %s56, %s70
      %p72 = scmp.eq.s32.totalorder %s30, 0
      %p73 = por %p71, %p72
      %s74 = ssub.s32 %s24, %s31
      %p75 = scmp.eq.s32.totalorder %s74, 0
      %s77 = sadd.s32 %s76, 1
      %s78 = scalar_select %p75, %s76, %s77
      %p81 = pneg %p75
      %p82 = scmp.eq.s32.totalorder %s24, 1
      %p83 = por %p81, %p82
      %p84 = scmp.ne.s32.totalorder %s76, %s79
      %p85 = scmp.eq.s32.totalorder %s24, 0
      %p86 = por %p84, %p85
      %p87 = scmp.ne.s32.totalorder %s76, %s79
      %p88 = scmp.eq.s32.totalorder %s29, 1
      %p89 = por %p87, %p88
      %p90 = scmp.ne.s32.totalorder %s79, %s80
      %p91 = scmp.eq.s32.totalorder %s29, 0
      %p92 = por %p90, %p91
      %p93 = scmp.ne.s32.totalorder %s79, %s80
      %p94 = scmp.eq.s32.totalorder %s30, 1
      %p95 = por %p93, %p94
      %p97 = scmp.ne.s32.totalorder %s80, %s96
      %p98 = scmp.eq.s32.totalorder %s30, 0
      %p99 = por %p97, %p98
      %s100 = ssub.s32 %s24, %s31
      %p101 = scmp.eq.s32.totalorder %s100, 0
      %s103 = sadd.s32 %s102, 1
      %s104 = scalar_select %p101, %s102, %s103
      %p107 = pneg %p101
      %p108 = scmp.eq.s32.totalorder %s24, 1
      %p109 = por %p107, %p108
      %p110 = scmp.ne.s32.totalorder %s102, %s105
      %p111 = scmp.eq.s32.totalorder %s24, 0
      %p112 = por %p110, %p111
      %p113 = scmp.ne.s32.totalorder %s102, %s105
      %p114 = scmp.eq.s32.totalorder %s29, 1
      %p115 = por %p113, %p114
      %p116 = scmp.ne.s32.totalorder %s105, %s106
      %p117 = scmp.eq.s32.totalorder %s29, 0
      %p118 = por %p116, %p117
      %p119 = scmp.ne.s32.totalorder %s105, %s106
      %p120 = scmp.eq.s32.totalorder %s30, 1
      %p121 = por %p119, %p120
      %p123 = scmp.ne.s32.totalorder %s106, %s122
      %p124 = scmp.eq.s32.totalorder %s30, 0
      %p125 = por %p123, %p124
      %s127 = sadd.s32 %s126, 1
      %p130 = scmp.eq.s32.totalorder %s24, 1
      %p131 = scmp.ne.s32.totalorder %s126, %s128
      %p132 = scmp.eq.s32.totalorder %s24, 0
      %p133 = por %p131, %p132
      %p134 = scmp.ne.s32.totalorder %s126, %s128
      %p135 = scmp.eq.s32.totalorder %s29, 1
      %p136 = por %p134, %p135
      %p137 = scmp.ne.s32.totalorder %s128, %s129
      %p138 = scmp.eq.s32.totalorder %s29, 0
      %p139 = por %p137, %p138
      %p140 = scmp.ne.s32.totalorder %s128, %s129
      %p141 = scmp.eq.s32.totalorder %s30, 1
      %p142 = por %p140, %p141
      %p144 = scmp.ne.s32.totalorder %s129, %s143
      %p145 = scmp.eq.s32.totalorder %s30, 0
      %p146 = por %p144, %p145
      %s148 = sadd.s32 %s147, 1
      %p151 = scmp.eq.s32.totalorder %s24, 1
      %p152 = scmp.ne.s32.totalorder %s147, %s149
      %p153 = scmp.eq.s32.totalorder %s24, 0
      %p154 = por %p152, %p153
      %p155 = scmp.ne.s32.totalorder %s147, %s149
      %p156 = scmp.eq.s32.totalorder %s29, 1
      %p157 = por %p155, %p156
      %p158 = scmp.ne.s32.totalorder %s149, %s150
      %p159 = scmp.eq.s32.totalorder %s29, 0
      %p160 = por %p158, %p159
      %p161 = scmp.ne.s32.totalorder %s149, %s150
      %p162 = scmp.eq.s32.totalorder %s30, 1
      %p163 = por %p161, %p162
      %p165 = scmp.ne.s32.totalorder %s150, %s164
      %p166 = scmp.eq.s32.totalorder %s30, 0
      %p167 = por %p165, %p166
      %s169 = sadd.s32 %s168, 1
      %p172 = scmp.eq.s32.totalorder %s24, 1
      %p173 = scmp.ne.s32.totalorder %s168, %s170
      %p174 = scmp.eq.s32.totalorder %s24, 0
      %p175 = por %p173, %p174
      %p176 = scmp.ne.s32.totalorder %s168, %s170
      %p177 = scmp.eq.s32.totalorder %s29, 1
      %p178 = por %p176, %p177
      %p179 = scmp.ne.s32.totalorder %s170, %s171
      %p180 = scmp.eq.s32.totalorder %s29, 0
      %p181 = por %p179, %p180
      %p182 = scmp.ne.s32.totalorder %s170, %s171
      %p183 = scmp.eq.s32.totalorder %s30, 1
      %p184 = por %p182, %p183
      %p186 = scmp.ne.s32.totalorder %s171, %s185
      %p187 = scmp.eq.s32.totalorder %s30, 0
      %p188 = por %p186, %p187
      %s189 = ssub.s32 %s24, %s31
      %p190 = scmp.eq.s32.totalorder %s189, 0
      %s192 = sadd.s32 %s191, 1
      %s193 = scalar_select %p190, %s191, %s192
      %p196 = pneg %p190
      %p197 = scmp.eq.s32.totalorder %s24, 1
      %p198 = por %p196, %p197
      %p199 = scmp.ne.s32.totalorder %s191, %s194
      %p200 = scmp.eq.s32.totalorder %s24, 0
      %p201 = por %p199, %p200
      %p202 = scmp.ne.s32.totalorder %s191, %s194
      %p203 = scmp.eq.s32.totalorder %s29, 1
      %p204 = por %p202, %p203
      %p205 = scmp.ne.s32.totalorder %s194, %s195
      %p206 = scmp.eq.s32.totalorder %s29, 0
      %p207 = por %p205, %p206
      %p208 = scmp.ne.s32.totalorder %s194, %s195
      %p209 = scmp.eq.s32.totalorder %s30, 1
      %p210 = por %p208, %p209
      %p212 = scmp.ne.s32.totalorder %s195, %s211
      %p213 = scmp.eq.s32.totalorder %s30, 0
      %p214 = por %p212, %p213
      %s215 = ssub.s32 %s24, %s31
      %p216 = scmp.eq.s32.totalorder %s215, 0
      %s218 = sadd.s32 %s217, 1
      %s219 = scalar_select %p216, %s217, %s218
      %p222 = pneg %p216
      %p223 = scmp.eq.s32.totalorder %s24, 1
      %p224 = por %p222, %p223
      %p225 = scmp.ne.s32.totalorder %s217, %s220
      %p226 = scmp.eq.s32.totalorder %s24, 0
      %p227 = por %p225, %p226
      %p228 = scmp.ne.s32.totalorder %s217, %s220
      %p229 = scmp.eq.s32.totalorder %s29, 1
      %p230 = por %p228, %p229
      %p231 = scmp.ne.s32.totalorder %s220, %s221
      %p232 = scmp.eq.s32.totalorder %s29, 0
      %p233 = por %p231, %p232
      %p234 = scmp.ne.s32.totalorder %s220, %s221
      %p235 = scmp.eq.s32.totalorder %s30, 1
      %p236 = por %p234, %p235
      %p238 = scmp.ne.s32.totalorder %s221, %s237
      %p239 = scmp.eq.s32.totalorder %s30, 0
      %p240 = por %p238, %p239
      %p241 = scmp.le.s32.totalorder 1, %s24
      %p242 = scmp.lt.s32.totalorder %s24, 3
      %p243 = pnand %p241, %p242
      %p244 = pneg %p243
      // Predicated region
      $region9: #{tpu_custom_call.1} parent=5 // pred_check
        _
      $region10: #{tpu_custom_call.1} parent=5 // pred_check_branch
        %246 = sbr.rel (%p243) target = $region12
      $region11: #{tpu_custom_call.1} parent=5 // pred_region
        %s247 = ssub.s32 %s24, 1
        // Predicated region
        $region13: #{tpu_custom_call.1} parent=11 // pred_check
          %p248 = pneg %p45
        $region14: #{tpu_custom_call.1} parent=11 // pred_check_branch
          %250 = sbr.rel (%p248) target = $region16
        $region15: #{tpu_custom_call.1} parent=11 // pred_region
          _
        $region16: #{tpu_custom_call.1} parent=11 // pred_fallthru
          _
        // Predicated region
        $region17: #{tpu_custom_call.1} parent=11 // pred_check
          %p251 = pneg %p66
        $region18: #{tpu_custom_call.1} parent=11 // pred_check_branch
          %253 = sbr.rel (%p251) target = $region20
        $region19: #{tpu_custom_call.1} parent=11 // pred_region
          _
        $region20: #{tpu_custom_call.1} parent=11 // pred_fallthru
          _
        // Predicated region
        $region21: #{tpu_custom_call.1} parent=11 // pred_check
          %p254 = pneg %p139
        $region22: #{tpu_custom_call.1} parent=11 // pred_check_branch
          %256 = sbr.rel (%p254) target = $region24
        $region23: #{tpu_custom_call.1} parent=11 // pred_region
          _
        $region24: #{tpu_custom_call.1} parent=11 // pred_fallthru
          _
        // Predicated region
        $region25: #{tpu_custom_call.1} parent=11 // pred_check
          %p257 = pneg %p160
        $region26: #{tpu_custom_call.1} parent=11 // pred_check_branch
          %259 = sbr.rel (%p257) target = $region28
        $region27: #{tpu_custom_call.1} parent=11 // pred_region
          _
        $region28: #{tpu_custom_call.1} parent=11 // pred_fallthru
          _
        // Predicated region
        $region29: #{tpu_custom_call.1} parent=11 // pred_check
          %p260 = pneg %p181
        $region30: #{tpu_custom_call.1} parent=11 // pred_check_branch
          %262 = sbr.rel (%p260) target = $region32
        $region31: #{tpu_custom_call.1} parent=11 // pred_region
          _
        $region32: #{tpu_custom_call.1} parent=11 // pred_fallthru
          _
      $region12: #{tpu_custom_call.1} parent=5 // pred_fallthru
        _
      %p263 = scmp.lt.s32.totalorder %s24, 2
      // Predicated region
      $region33: #{tpu_custom_call.1} parent=5 // pred_check
        %p264 = pneg %p263
      $region34: #{tpu_custom_call.1} parent=5 // pred_check_branch
        %266 = sbr.rel (%p264) target = $region36
      $region35: #{tpu_custom_call.1} parent=5 // pred_region
        // Predicated region
        $region37: #{tpu_custom_call.1} parent=35 // pred_check
          %p267 = pneg %p86
        $region38: #{tpu_custom_call.1} parent=35 // pred_check_branch
          %269 = sbr.rel (%p267) target = $region40
        $region39: #{tpu_custom_call.1} parent=35 // pred_region
          %s270 = sand.u32 %s76, 1
          %s271 = scalar_lea.sflag [#allocation3], %s270
          %s272 = sand.u32 %s76, 1
          %s273 = smul.addr %s272, 672
          %s274 = scalar_lea.vmem [#allocation2], %s273
          %s275 = smul.u32 2, %s24
          %277 = vsyncadd %s271, 0
          %s278 = smul.addr %s275, 8
          %s279 = scalar_lea.hbm %s2, %s278
          %s280 = sshll.u32 %s279, 4
          %s281 = int_to_ptr.hbm [resolvable:$true] %s280
          %s282 = sshll.u32 %s274, 4
          %s283 = int_to_ptr.vmem [resolvable:$true] %s282
          %288 = dma.hbm_to_vmem [thread:$0]  %s281, 10752, %s283, %s271, 512, 256, 16
        $region40: #{tpu_custom_call.1} parent=35 // pred_fallthru
          _
        // Predicated region
        $region41: #{tpu_custom_call.1} parent=35 // pred_check
          %p289 = pneg %p112
        $region42: #{tpu_custom_call.1} parent=35 // pred_check_branch
          %291 = sbr.rel (%p289) target = $region44
        $region43: #{tpu_custom_call.1} parent=35 // pred_region
          %s292 = sand.u32 %s102, 1
          %s293 = sand.u32 %s102, 1
          %s294 = smul.addr %s293, 64
          %s295 = scalar_lea.vmem [#allocation5], %s294
          %s296 = smul.u32 2, %s24
          %s297 = smul.addr %s296, 8
          %s298 = scalar_lea.vmem %s3, %s297
          // Predicated region
          $region45: #{tpu_custom_call.1} parent=43 // pred_check
            _
          $region46: #{tpu_custom_call.1} parent=43 // pred_check_branch
            %300 = sbr.rel (0) target = $region48
          $region47: #{tpu_custom_call.1} parent=43 // pred_region
            // Predicated region
            $region49: #{tpu_custom_call.1} parent=47 // pred_check
              _
            $region50: #{tpu_custom_call.1} parent=47 // pred_check_branch
              %302 = sbr.rel (0) target = $region52
            $region51: #{tpu_custom_call.1} parent=47 // pred_region
              loop: start=0, step=1, limit=1
              $region53: #{tpu_custom_call.1} parent=51 // loop_pre_header
                _
              $region54: #{tpu_custom_call.1} parent=51 // loop_header
                %s304 = sphi 0, %s308
                %p305 = scmp.ge.s32.totalorder %s304, 1
                %s309 = sphi %s298, %s298
                %s310 = sphi %s295, %s295
              $region55: #{tpu_custom_call.1} parent=51 // loop_header_branch
                %307 = sbr.rel (%p305) target = $region59
              $region56: #{tpu_custom_call.1} parent=51 // loop_body
                %v311 = vld [vmem:[%s309] sm:$0xff]
                %312 = vst [vmem:[%s310] sm:$0xff] %v311
                %v313 = vld [vmem:[%s309 + $0x8] sm:$0xff]
                %314 = vst [vmem:[%s310 + $0x8] sm:$0xff] %v313
                %v315 = vld [vmem:[%s309 + $0x20] sm:$0xff]
                %316 = vst [vmem:[%s310 + $0x10] sm:$0xff] %v315
                %v317 = vld [vmem:[%s309 + $0x28] sm:$0xff]
                %318 = vst [vmem:[%s310 + $0x18] sm:$0xff] %v317
                %v319 = vld [vmem:[%s309 + $0x40] sm:$0xff]
                %320 = vst [vmem:[%s310 + $0x20] sm:$0xff] %v319
                %v321 = vld [vmem:[%s309 + $0x48] sm:$0xff]
                %322 = vst [vmem:[%s310 + $0x28] sm:$0xff] %v321
                %v323 = vld [vmem:[%s309 + $0x60] sm:$0xff]
                %324 = vst [vmem:[%s310 + $0x30] sm:$0xff] %v323
                %v325 = vld [vmem:[%s309 + $0x68] sm:$0xff]
                %326 = vst [vmem:[%s310 + $0x38] sm:$0xff] %v325
              $region57: #{tpu_custom_call.1} parent=51 // loop_footer
                %s308 = sadd.s32 1, %s304
              $region58: #{tpu_custom_call.1} parent=51 // loop_footer_branch
                %303 = sbr.rel target = $region54
              $region59: #{tpu_custom_call.1} parent=51 // loop_exit
                _
            $region52: #{tpu_custom_call.1} parent=47 // pred_fallthru
              _
            // Predicated region
            $region60: #{tpu_custom_call.1} parent=47 // pred_check
              _
            $region61: #{tpu_custom_call.1} parent=47 // pred_check_branch
              %328 = sbr.rel target = $region63
            $region62: #{tpu_custom_call.1} parent=47 // pred_region
              _
            $region63: #{tpu_custom_call.1} parent=47 // pred_fallthru
              _
          $region48: #{tpu_custom_call.1} parent=43 // pred_fallthru
            _
          %329 = vnop
        $region44: #{tpu_custom_call.1} parent=35 // pred_fallthru
          _
      $region36: #{tpu_custom_call.1} parent=5 // pred_fallthru
        _
      %p330 = scmp.le.s32.totalorder 1, %s24
      %p331 = scmp.lt.s32.totalorder %s24, 3
      %p332 = pnand %p330, %p331
      %p333 = pneg %p332
      // Predicated region
      $region64: #{tpu_custom_call.1} parent=5 // pred_check
        _
      $region65: #{tpu_custom_call.1} parent=5 // pred_check_branch
        %335 = sbr.rel (%p332) target = $region67
      $region66: #{tpu_custom_call.1} parent=5 // pred_region
        %s336 = ssub.s32 %s24, 1
        %s337 = sand.u32 %s79, 1
        %s338 = scalar_lea.sflag [#allocation3], %s337
        %s339 = sand.u32 %s79, 1
        %s340 = smul.addr %s339, 672
        %s341 = scalar_lea.vmem [#allocation2], %s340
        // Predicated region
        $region68: #{tpu_custom_call.1} parent=66 // pred_check
          %p342 = pneg %p92
        $region69: #{tpu_custom_call.1} parent=66 // pred_check_branch
          %344 = sbr.rel (%p342) target = $region71
        $region70: #{tpu_custom_call.1} parent=66 // pred_region
          %346 = dma.done %s338, 10752
        $region71: #{tpu_custom_call.1} parent=66 // pred_fallthru
          _
        %s347 = sand.u32 %s105, 1
        %s348 = sand.u32 %s105, 1
        %s349 = smul.addr %s348, 64
        %s350 = scalar_lea.vmem [#allocation5], %s349
        // Predicated region
        $region72: #{tpu_custom_call.1} parent=66 // pred_check
          %p351 = pneg %p118
        $region73: #{tpu_custom_call.1} parent=66 // pred_check_branch
          %353 = sbr.rel (%p351) target = $region75
        $region74: #{tpu_custom_call.1} parent=66 // pred_region
          _
        $region75: #{tpu_custom_call.1} parent=66 // pred_fallthru
          _
        %p354 = pneg %p45
        %p355 = pneg %p42
        %p356 = pneg %p66
        %p357 = pneg %p63
        %s358 = sand.u32 %s79, 1
        %s359 = scalar_lea.sflag [#allocation3], %s358
        %s360 = sand.u32 %s79, 1
        %s361 = smul.addr %s360, 672
        %s362 = scalar_lea.vmem [#allocation2], %s361
        %p363 = pneg %p92
        %p364 = pneg %p89
        %s365 = sand.u32 %s105, 1
        %s366 = sand.u32 %s105, 1
        %s367 = smul.addr %s366, 64
        %s368 = scalar_lea.vmem [#allocation5], %s367
        %p369 = pneg %p118
        %p370 = pneg %p115
        %p371 = pneg %p139
        %p372 = pneg %p136
        %p373 = pneg %p160
        %p374 = pneg %p157
        %p375 = pneg %p181
        %p376 = pneg %p178
        %p377 = pneg %p207
        %p378 = pneg %p204
        %s379 = sand.u32 %s194, 1
        %s380 = scalar_lea.sflag [#allocation4], %s379
        %s381 = sand.u32 %s194, 1
        %s382 = smul.addr %s381, 64
        %s383 = scalar_lea.vmem [#allocation6], %s382
        %p384 = pneg %p233
        %p385 = pneg %p230
        %s386 = sand.u32 %s220, 1
        %s387 = scalar_lea.sflag [#allocation8], %s386
        %s388 = sand.u32 %s220, 1
        %s389 = smul.addr %s388, 64
        %s390 = scalar_lea.vmem [#allocation7], %s389
        %s391 = smul.u32 2, %s29
        %s392 = smul.u32 2, %s29
        %s393 = smul.u32 2, %s29
        %s394 = smul.u32 2, %s29
        %v395 = vld [vmem:[%s0] sm:$0xff]
        %v396 = vld [vmem:[%s0 + $0x8] sm:$0xff]
        %v397 = vld [vmem:[%s0 + $0x10] sm:$0xff]
        %v398 = vld [vmem:[%s0 + $0x18] sm:$0xff]
        %v399 = vld [vmem:[%s0 + $0x20] sm:$0xff]
        %v400 = vld [vmem:[%s0 + $0x28] sm:$0xff]
        %v401 = vld [vmem:[%s0 + $0x30] sm:$0xff]
        %v402 = vld [vmem:[%s0 + $0x38] sm:$0xff]
        %v403 = vld [vmem:[%s0 + $0x40] sm:$0xff]
        %v404 = vld [vmem:[%s0 + $0x48] sm:$0xff]
        %v405 = vld [vmem:[%s0 + $0x50] sm:$0xff]
        %v406 = vld [vmem:[%s0 + $0x58] sm:$0xff]
        %v407 = vld [vmem:[%s0 + $0x60] sm:$0xff]
        %v408 = vld [vmem:[%s0 + $0x68] sm:$0xff]
        %v409 = vld [vmem:[%s0 + $0x70] sm:$0xff]
        %v410 = vld [vmem:[%s0 + $0x78] sm:$0xff]
        %v411 = vld [vmem:[%s0 + $0x80] sm:$0xff]
        %v412 = vld [vmem:[%s0 + $0x88] sm:$0xff]
        %v413 = vld [vmem:[%s0 + $0x90] sm:$0xff]
        %v414 = vld [vmem:[%s0 + $0x98] sm:$0xff]
        %v415 = vld [vmem:[%s0 + $0xa0] sm:$0xff]
        %v416 = vld [vmem:[%s0 + $0xa8] sm:$0xff]
        %v417 = vld [vmem:[%s0 + $0xb0] sm:$0xff]
        %v418 = vld [vmem:[%s0 + $0xb8] sm:$0xff]
        %v419 = vld [vmem:[%s0 + $0xc0] sm:$0xff]
        %v420 = vld [vmem:[%s0 + $0xc8] sm:$0xff]
        %v421 = vld [vmem:[%s0 + $0xd0] sm:$0xff]
        %v422 = vld [vmem:[%s0 + $0xd8] sm:$0xff]
        %v423 = vld [vmem:[%s0 + $0xe0] sm:$0xff]
        %v424 = vld [vmem:[%s0 + $0xe8] sm:$0xff]
        %v425 = vld [vmem:[%s0 + $0xf0] sm:$0xff]
        %v426 = vld [vmem:[%s0 + $0xf8] sm:$0xff]
        %v427 = vld [vmem:[%s0 + $0x100] sm:$0xff]
        %v428 = vld [vmem:[%s0 + $0x108] sm:$0xff]
        %v429 = vld [vmem:[%s0 + $0x110] sm:$0xff]
        %v430 = vld [vmem:[%s0 + $0x118] sm:$0xff]
        %v431 = vld [vmem:[%s0 + $0x120] sm:$0xff]
        %v432 = vld [vmem:[%s0 + $0x128] sm:$0xff]
        %v433 = vld [vmem:[%s0 + $0x130] sm:$0xff]
        %v434 = vld [vmem:[%s0 + $0x138] sm:$0xff]
        %v435 = vld [vmem:[%s0 + $0x140] sm:$0xff]
        %v436 = vld [vmem:[%s0 + $0x148] sm:$0xff]
        %v437 = vld [vmem:[%s0 + $0x150] sm:$0xff]
        %v438 = vld [vmem:[%s0 + $0x158] sm:$0xff]
        %v439 = vld [vmem:[%s0 + $0x160] sm:$0xff]
        %v440 = vld [vmem:[%s0 + $0x168] sm:$0xff]
        %v441 = vld [vmem:[%s0 + $0x170] sm:$0xff]
        %v442 = vld [vmem:[%s0 + $0x178] sm:$0xff]
        %v443 = vld [vmem:[%s341] sm:$0xff]
        %v444 = vld [vmem:[%s341 + $0x8] sm:$0xff]
        %v445 = vld [vmem:[%s341 + $0x10] sm:$0xff]
        %v446 = vld [vmem:[%s341 + $0x18] sm:$0xff]
        %v447 = vld [vmem:[%s341 + $0x20] sm:$0xff]
        %v448 = vld [vmem:[%s341 + $0x28] sm:$0xff]
        %v449 = vld [vmem:[%s341 + $0x30] sm:$0xff]
        %v450 = vld [vmem:[%s341 + $0x38] sm:$0xff]
        %v451 = vld [vmem:[%s341 + $0x40] sm:$0xff]
        %v452 = vld [vmem:[%s341 + $0x48] sm:$0xff]
        %v453 = vld [vmem:[%s341 + $0x50] sm:$0xff]
        %v454 = vld [vmem:[%s341 + $0x58] sm:$0xff]
        %v455 = vld [vmem:[%s341 + $0x60] sm:$0xff]
        %v456 = vld [vmem:[%s341 + $0x68] sm:$0xff]
        %v457 = vld [vmem:[%s341 + $0x70] sm:$0xff]
        %v458 = vld [vmem:[%s341 + $0x78] sm:$0xff]
        %v459 = vld [vmem:[%s341 + $0x80] sm:$0xff]
        %v460 = vld [vmem:[%s341 + $0x88] sm:$0xff]
        %v461 = vld [vmem:[%s341 + $0x90] sm:$0xff]
        %v462 = vld [vmem:[%s341 + $0x98] sm:$0xff]
        %v463 = vld [vmem:[%s341 + $0xa0] sm:$0xff]
        %v464 = vld [vmem:[%s341 + $0xa8] sm:$0xff]
        %v465 = vld [vmem:[%s341 + $0xb0] sm:$0xff]
        %v466 = vld [vmem:[%s341 + $0xb8] sm:$0xff]
        %v467 = vld [vmem:[%s341 + $0xc0] sm:$0xff]
        %v468 = vld [vmem:[%s341 + $0xc8] sm:$0xff]
        %v469 = vld [vmem:[%s341 + $0xd0] sm:$0xff]
        %v470 = vld [vmem:[%s341 + $0xd8] sm:$0xff]
        %v471 = vld [vmem:[%s341 + $0xe0] sm:$0xff]
        %v472 = vld [vmem:[%s341 + $0xe8] sm:$0xff]
        %v473 = vld [vmem:[%s341 + $0xf0] sm:$0xff]
        %v474 = vld [vmem:[%s341 + $0xf8] sm:$0xff]
        %v475 = vld [vmem:[%s341 + $0x100] sm:$0xff]
        %v476 = vld [vmem:[%s341 + $0x108] sm:$0xff]
        %v477 = vld [vmem:[%s341 + $0x110] sm:$0xff]
        %v478 = vld [vmem:[%s341 + $0x118] sm:$0xff]
        %v479 = vld [vmem:[%s341 + $0x120] sm:$0xff]
        %v480 = vld [vmem:[%s341 + $0x128] sm:$0xff]
        %v481 = vld [vmem:[%s341 + $0x130] sm:$0xff]
        %v482 = vld [vmem:[%s341 + $0x138] sm:$0xff]
        %v483 = vld [vmem:[%s341 + $0x140] sm:$0xff]
        %v484 = vld [vmem:[%s341 + $0x148] sm:$0xff]
        %v485 = vld [vmem:[%s341 + $0x150] sm:$0xff]
        %v486 = vld [vmem:[%s341 + $0x158] sm:$0xff]
        %v487 = vld [vmem:[%s341 + $0x160] sm:$0xff]
        %v488 = vld [vmem:[%s341 + $0x168] sm:$0xff]
        %v489 = vld [vmem:[%s341 + $0x170] sm:$0xff]
        %v490 = vld [vmem:[%s341 + $0x178] sm:$0xff]
        %v491 = vld [vmem:[%s341 + $0x180] sm:$0xff]
        %v492 = vld [vmem:[%s341 + $0x188] sm:$0xff]
        %v493 = vld [vmem:[%s341 + $0x190] sm:$0xff]
        %v494 = vld [vmem:[%s341 + $0x198] sm:$0xff]
        %v495 = vld [vmem:[%s341 + $0x1a0] sm:$0xff]
        %v496 = vld [vmem:[%s341 + $0x1a8] sm:$0xff]
        %v497 = vld [vmem:[%s341 + $0x1b0] sm:$0xff]
        %v498 = vld [vmem:[%s341 + $0x1b8] sm:$0xff]
        %v499 = vld [vmem:[%s341 + $0x1c0] sm:$0xff]
        %v500 = vld [vmem:[%s341 + $0x1c8] sm:$0xff]
        %v501 = vld [vmem:[%s341 + $0x1d0] sm:$0xff]
        %v502 = vld [vmem:[%s341 + $0x1d8] sm:$0xff]
        %v503 = vld [vmem:[%s341 + $0x1e0] sm:$0xff]
        %v504 = vld [vmem:[%s341 + $0x1e8] sm:$0xff]
        %v505 = vld [vmem:[%s341 + $0x1f0] sm:$0xff]
        %v506 = vld [vmem:[%s341 + $0x1f8] sm:$0xff]
        %v507 = vld [vmem:[%s341 + $0x200] sm:$0xff]
        %v508 = vld [vmem:[%s341 + $0x208] sm:$0xff]
        %v509 = vld [vmem:[%s341 + $0x210] sm:$0xff]
        %v510 = vld [vmem:[%s341 + $0x218] sm:$0xff]
        %v511 = vld [vmem:[%s341 + $0x220] sm:$0xff]
        %v512 = vld [vmem:[%s341 + $0x228] sm:$0xff]
        %v513 = vld [vmem:[%s341 + $0x230] sm:$0xff]
        %v514 = vld [vmem:[%s341 + $0x238] sm:$0xff]
        %v515 = vld [vmem:[%s341 + $0x240] sm:$0xff]
        %v516 = vld [vmem:[%s341 + $0x248] sm:$0xff]
        %v517 = vld [vmem:[%s341 + $0x250] sm:$0xff]
        %v518 = vld [vmem:[%s341 + $0x258] sm:$0xff]
        %v519 = vld [vmem:[%s341 + $0x260] sm:$0xff]
        %v520 = vld [vmem:[%s341 + $0x268] sm:$0xff]
        %v521 = vld [vmem:[%s341 + $0x270] sm:$0xff]
        %v522 = vld [vmem:[%s341 + $0x278] sm:$0xff]
        %v523 = vld [vmem:[%s341 + $0x280] sm:$0xff]
        %v524 = vld [vmem:[%s341 + $0x288] sm:$0xff]
        %v525 = vld [vmem:[%s341 + $0x290] sm:$0xff]
        %v526 = vld [vmem:[%s341 + $0x298] sm:$0xff]
        %v527 = vld [vmem:[%s1] sm:$0xff]
        %v528 = vld [vmem:[%s1 + $0x8] sm:$0xff]
        %v529 = vld [vmem:[%s1 + $0x10] sm:$0xff]
        %v530 = vld [vmem:[%s1 + $0x18] sm:$0xff]
        %v531 = vld [vmem:[%s1 + $0x20] sm:$0xff]
        %v532 = vld [vmem:[%s1 + $0x28] sm:$0xff]
        %v533 = vld [vmem:[%s1 + $0x30] sm:$0xff]
        %v534 = vld [vmem:[%s1 + $0x38] sm:$0xff]
        %v535 = vld [vmem:[%s1 + $0x40] sm:$0xff]
        %v536 = vld [vmem:[%s1 + $0x48] sm:$0xff]
        %v537 = vld [vmem:[%s1 + $0x50] sm:$0xff]
        %v538 = vld [vmem:[%s1 + $0x58] sm:$0xff]
        %v539 = vld [vmem:[%s1 + $0x60] sm:$0xff]
        %v540 = vld [vmem:[%s1 + $0x68] sm:$0xff]
        %v541 = vld [vmem:[%s1 + $0x70] sm:$0xff]
        %v542 = vld [vmem:[%s1 + $0x78] sm:$0xff]
        %544 = vset.pattern.permute.xlu0 0
        %545 = vperm.xlu0 %544, %v527
        %v546 = vpop.permute.xlu0 %545
        %549 = vset.pattern.permute.xlu0 0
        %550 = vperm.xlu0 %549, %v528
        %v551 = vpop.permute.xlu0 %550
        %554 = vset.pattern.permute.xlu0 0
        %555 = vperm.xlu0 %554, %v529
        %v556 = vpop.permute.xlu0 %555
        %559 = vset.pattern.permute.xlu0 0
        %560 = vperm.xlu0 %559, %v530
        %v561 = vpop.permute.xlu0 %560
        %564 = vset.pattern.permute.xlu0 0
        %565 = vperm.xlu0 %564, %v531
        %v566 = vpop.permute.xlu0 %565
        %569 = vset.pattern.permute.xlu0 0
        %570 = vperm.xlu0 %569, %v532
        %v571 = vpop.permute.xlu0 %570
        %574 = vset.pattern.permute.xlu0 0
        %575 = vperm.xlu0 %574, %v533
        %v576 = vpop.permute.xlu0 %575
        %579 = vset.pattern.permute.xlu0 0
        %580 = vperm.xlu0 %579, %v534
        %v581 = vpop.permute.xlu0 %580
        %584 = vset.pattern.permute.xlu0 0
        %585 = vperm.xlu0 %584, %v535
        %v586 = vpop.permute.xlu0 %585
        %589 = vset.pattern.permute.xlu0 0
        %590 = vperm.xlu0 %589, %v536
        %v591 = vpop.permute.xlu0 %590
        %594 = vset.pattern.permute.xlu0 0
        %595 = vperm.xlu0 %594, %v537
        %v596 = vpop.permute.xlu0 %595
        %599 = vset.pattern.permute.xlu0 0
        %600 = vperm.xlu0 %599, %v538
        %v601 = vpop.permute.xlu0 %600
        %604 = vset.pattern.permute.xlu0 0
        %605 = vperm.xlu0 %604, %v539
        %v606 = vpop.permute.xlu0 %605
        %609 = vset.pattern.permute.xlu0 0
        %610 = vperm.xlu0 %609, %v540
        %v611 = vpop.permute.xlu0 %610
        %614 = vset.pattern.permute.xlu0 0
        %615 = vperm.xlu0 %614, %v541
        %v616 = vpop.permute.xlu0 %615
        %619 = vset.pattern.permute.xlu0 0
        %620 = vperm.xlu0 %619, %v542
        %v621 = vpop.permute.xlu0 %620
        %vm623 = vcmask 654336
        %v625 = vsel %vm623, %v397, 0
        %v628 = vsel %vm623, %v400, 0
        %v631 = vsel %vm623, %v403, 0
        %v634 = vsel %vm623, %v406, 0
        %v637 = vsel %vm623, %v409, 0
        %v640 = vsel %vm623, %v412, 0
        %v643 = vsel %vm623, %v415, 0
        %v646 = vsel %vm623, %v418, 0
        %v649 = vsel %vm623, %v421, 0
        %v652 = vsel %vm623, %v424, 0
        %v655 = vsel %vm623, %v427, 0
        %v658 = vsel %vm623, %v430, 0
        %v661 = vsel %vm623, %v433, 0
        %v664 = vsel %vm623, %v436, 0
        %v667 = vsel %vm623, %v439, 0
        %v670 = vsel %vm623, %v442, 0
        %672 = vmatpush.msra.mxu0 %v473
        %673 = vmatpush.msra.mxu0 %v471
        %674 = vmatpush.msra.mxu0 %v469
        %675 = vmatpush.msra.mxu0 %v467
        %676 = vmatpush.msra.mxu0 %v465
        %677 = vmatpush.msra.mxu0 %v463
        %678 = vmatpush.msra.mxu0 %v461
        %679 = vmatpush.msra.mxu0 %v459
        %680 = vmatpush.msra.mxu0 %v457
        %681 = vmatpush.msra.mxu0 %v455
        %682 = vmatpush.msra.mxu0 %v453
        %683 = vmatpush.msra.mxu0 %v451
        %684 = vmatpush.msra.mxu0 %v449
        %685 = vmatpush.msra.mxu0 %v447
        %686 = vmatpush.msra.mxu0 %v445
        %687 = vmatpush.msra.mxu0 %v443
        %688 = vmatmul.f32.gmra.mxu0 %v395
        %v689 = vpop.f32.mrf.mxu0
        %v690 = vadd.f32 %v546, %v689
        %691 = vmatmul.f32.gmra.mxu0 %v398
        %v692 = vpop.f32.mrf.mxu0
        %v693 = vadd.f32 %v551, %v692
        %694 = vmatmul.f32.gmra.mxu0 %v401
        %v695 = vpop.f32.mrf.mxu0
        %v696 = vadd.f32 %v556, %v695
        %697 = vmatmul.f32.gmra.mxu0 %v404
        %v698 = vpop.f32.mrf.mxu0
        %v699 = vadd.f32 %v561, %v698
        %700 = vmatmul.f32.gmra.mxu0 %v407
        %v701 = vpop.f32.mrf.mxu0
        %v702 = vadd.f32 %v566, %v701
        %703 = vmatmul.f32.gmra.mxu0 %v410
        %v704 = vpop.f32.mrf.mxu0
        %v705 = vadd.f32 %v571, %v704
        %706 = vmatmul.f32.gmra.mxu0 %v413
        %v707 = vpop.f32.mrf.mxu0
        %v708 = vadd.f32 %v576, %v707
        %709 = vmatmul.f32.gmra.mxu0 %v416
        %v710 = vpop.f32.mrf.mxu0
        %v711 = vadd.f32 %v581, %v710
        %712 = vmatmul.f32.gmra.mxu0 %v419
        %v713 = vpop.f32.mrf.mxu0
        %v714 = vadd.f32 %v586, %v713
        %715 = vmatmul.f32.gmra.mxu0 %v422
        %v716 = vpop.f32.mrf.mxu0
        %v717 = vadd.f32 %v591, %v716
        %718 = vmatmul.f32.gmra.mxu0 %v425
        %v719 = vpop.f32.mrf.mxu0
        %v720 = vadd.f32 %v596, %v719
        %721 = vmatmul.f32.gmra.mxu0 %v428
        %v722 = vpop.f32.mrf.mxu0
        %v723 = vadd.f32 %v601, %v722
        %724 = vmatmul.f32.gmra.mxu0 %v431
        %v725 = vpop.f32.mrf.mxu0
        %v726 = vadd.f32 %v606, %v725
        %727 = vmatmul.f32.gmra.mxu0 %v434
        %v728 = vpop.f32.mrf.mxu0
        %v729 = vadd.f32 %v611, %v728
        %730 = vmatmul.f32.gmra.mxu0 %v437
        %v731 = vpop.f32.mrf.mxu0
        %v732 = vadd.f32 %v616, %v731
        %733 = vmatmul.f32.gmra.mxu0 %v440
        %v734 = vpop.f32.mrf.mxu0
        %v735 = vadd.f32 %v621, %v734
        %736 = vdwg.mxu0
        %737 = vmatpush.msra.mxu0 %v505
        %738 = vmatpush.msra.mxu0 %v503
        %739 = vmatpush.msra.mxu0 %v501
        %740 = vmatpush.msra.mxu0 %v499
        %741 = vmatpush.msra.mxu0 %v497
        %742 = vmatpush.msra.mxu0 %v495
        %743 = vmatpush.msra.mxu0 %v493
        %744 = vmatpush.msra.mxu0 %v491
        %745 = vmatpush.msra.mxu0 %v489
        %746 = vmatpush.msra.mxu0 %v487
        %747 = vmatpush.msra.mxu0 %v485
        %748 = vmatpush.msra.mxu0 %v483
        %749 = vmatpush.msra.mxu0 %v481
        %750 = vmatpush.msra.mxu0 %v479
        %751 = vmatpush.msra.mxu0 %v477
        %752 = vmatpush.msra.mxu0 %v475
        %753 = vmatmul.f32.gmra.mxu0 %v396
        %v754 = vpop.f32.mrf.mxu0
        %v755 = vadd.f32 %v690, %v754
        %756 = vmatmul.f32.gmra.mxu0 %v399
        %v757 = vpop.f32.mrf.mxu0
        %v758 = vadd.f32 %v693, %v757
        %759 = vmatmul.f32.gmra.mxu0 %v402
        %v760 = vpop.f32.mrf.mxu0
        %v761 = vadd.f32 %v696, %v760
        %762 = vmatmul.f32.gmra.mxu0 %v405
        %v763 = vpop.f32.mrf.mxu0
        %v764 = vadd.f32 %v699, %v763
        %765 = vmatmul.f32.gmra.mxu0 %v408
        %v766 = vpop.f32.mrf.mxu0
        %v767 = vadd.f32 %v702, %v766
        %768 = vmatmul.f32.gmra.mxu0 %v411
        %v769 = vpop.f32.mrf.mxu0
        %v770 = vadd.f32 %v705, %v769
        %771 = vmatmul.f32.gmra.mxu0 %v414
        %v772 = vpop.f32.mrf.mxu0
        %v773 = vadd.f32 %v708, %v772
        %774 = vmatmul.f32.gmra.mxu0 %v417
        %v775 = vpop.f32.mrf.mxu0
        %v776 = vadd.f32 %v711, %v775
        %777 = vmatmul.f32.gmra.mxu0 %v420
        %v778 = vpop.f32.mrf.mxu0
        %v779 = vadd.f32 %v714, %v778
        %780 = vmatmul.f32.gmra.mxu0 %v423
        %v781 = vpop.f32.mrf.mxu0
        %v782 = vadd.f32 %v717, %v781
        %783 = vmatmul.f32.gmra.mxu0 %v426
        %v784 = vpop.f32.mrf.mxu0
        %v785 = vadd.f32 %v720, %v784
        %786 = vmatmul.f32.gmra.mxu0 %v429
        %v787 = vpop.f32.mrf.mxu0
        %v788 = vadd.f32 %v723, %v787
        %789 = vmatmul.f32.gmra.mxu0 %v432
        %v790 = vpop.f32.mrf.mxu0
        %v791 = vadd.f32 %v726, %v790
        %792 = vmatmul.f32.gmra.mxu0 %v435
        %v793 = vpop.f32.mrf.mxu0
        %v794 = vadd.f32 %v729, %v793
        %795 = vmatmul.f32.gmra.mxu0 %v438
        %v796 = vpop.f32.mrf.mxu0
        %v797 = vadd.f32 %v732, %v796
        %798 = vmatmul.f32.gmra.mxu0 %v441
        %v799 = vpop.f32.mrf.mxu0
        %v800 = vadd.f32 %v735, %v799
        %801 = vdwg.mxu0
        %802 = vmatpush.msra.mxu0 0.0
        %803 = vmatpush.msra.mxu0 0.0
        %804 = vmatpush.msra.mxu0 0.0
        %805 = vmatpush.msra.mxu0 0.0
        %806 = vmatpush.msra.mxu0 0.0
        %807 = vmatpush.msra.mxu0 0.0
        %808 = vmatpush.msra.mxu0 %v525
        %809 = vmatpush.msra.mxu0 %v523
        %810 = vmatpush.msra.mxu0 %v521
        %811 = vmatpush.msra.mxu0 %v519
        %812 = vmatpush.msra.mxu0 %v517
        %813 = vmatpush.msra.mxu0 %v515
        %814 = vmatpush.msra.mxu0 %v513
        %815 = vmatpush.msra.mxu0 %v511
        %816 = vmatpush.msra.mxu0 %v509
        %817 = vmatpush.msra.mxu0 %v507
        %818 = vmatmul.f32.gmra.mxu0 %v625
        %v819 = vpop.f32.mrf.mxu0
        %v820 = vadd.f32 %v755, %v819
        %821 = vmatmul.f32.gmra.mxu0 %v628
        %v822 = vpop.f32.mrf.mxu0
        %v823 = vadd.f32 %v758, %v822
        %824 = vmatmul.f32.gmra.mxu0 %v631
        %v825 = vpop.f32.mrf.mxu0
        %v826 = vadd.f32 %v761, %v825
        %827 = vmatmul.f32.gmra.mxu0 %v634
        %v828 = vpop.f32.mrf.mxu0
        %v829 = vadd.f32 %v764, %v828
        %830 = vmatmul.f32.gmra.mxu0 %v637
        %v831 = vpop.f32.mrf.mxu0
        %v832 = vadd.f32 %v767, %v831
        %833 = vmatmul.f32.gmra.mxu0 %v640
        %v834 = vpop.f32.mrf.mxu0
        %v835 = vadd.f32 %v770, %v834
        %836 = vmatmul.f32.gmra.mxu0 %v643
        %v837 = vpop.f32.mrf.mxu0
        %v838 = vadd.f32 %v773, %v837
        %839 = vmatmul.f32.gmra.mxu0 %v646
        %v840 = vpop.f32.mrf.mxu0
        %v841 = vadd.f32 %v776, %v840
        %842 = vmatmul.f32.gmra.mxu0 %v649
        %v843 = vpop.f32.mrf.mxu0
        %v844 = vadd.f32 %v779, %v843
        %845 = vmatmul.f32.gmra.mxu0 %v652
        %v846 = vpop.f32.mrf.mxu0
        %v847 = vadd.f32 %v782, %v846
        %848 = vmatmul.f32.gmra.mxu0 %v655
        %v849 = vpop.f32.mrf.mxu0
        %v850 = vadd.f32 %v785, %v849
        %851 = vmatmul.f32.gmra.mxu0 %v658
        %v852 = vpop.f32.mrf.mxu0
        %v853 = vadd.f32 %v788, %v852
        %854 = vmatmul.f32.gmra.mxu0 %v661
        %v855 = vpop.f32.mrf.mxu0
        %v856 = vadd.f32 %v791, %v855
        %857 = vmatmul.f32.gmra.mxu0 %v664
        %v858 = vpop.f32.mrf.mxu0
        %v859 = vadd.f32 %v794, %v858
        %860 = vmatmul.f32.gmra.mxu0 %v667
        %v861 = vpop.f32.mrf.mxu0
        %v862 = vadd.f32 %v797, %v861
        %863 = vmatmul.f32.gmra.mxu0 %v670
        %v864 = vpop.f32.mrf.mxu0
        %v865 = vadd.f32 %v800, %v864
        %866 = vdwg.mxu0
        %867 = vmatpush.msra.mxu0 %v474
        %868 = vmatpush.msra.mxu0 %v472
        %869 = vmatpush.msra.mxu0 %v470
        %870 = vmatpush.msra.mxu0 %v468
        %871 = vmatpush.msra.mxu0 %v466
        %872 = vmatpush.msra.mxu0 %v464
        %873 = vmatpush.msra.mxu0 %v462
        %874 = vmatpush.msra.mxu0 %v460
        %875 = vmatpush.msra.mxu0 %v458
        %876 = vmatpush.msra.mxu0 %v456
        %877 = vmatpush.msra.mxu0 %v454
        %878 = vmatpush.msra.mxu0 %v452
        %879 = vmatpush.msra.mxu0 %v450
        %880 = vmatpush.msra.mxu0 %v448
        %881 = vmatpush.msra.mxu0 %v446
        %882 = vmatpush.msra.mxu0 %v444
        %883 = vmatmul.f32.gmra.mxu0 %v395
        %v884 = vpop.f32.mrf.mxu0
        %v885 = vadd.f32 %v546, %v884
        %886 = vmatmul.f32.gmra.mxu0 %v398
        %v887 = vpop.f32.mrf.mxu0
        %v888 = vadd.f32 %v551, %v887
        %889 = vmatmul.f32.gmra.mxu0 %v401
        %v890 = vpop.f32.mrf.mxu0
        %v891 = vadd.f32 %v556, %v890
        %892 = vmatmul.f32.gmra.mxu0 %v404
        %v893 = vpop.f32.mrf.mxu0
        %v894 = vadd.f32 %v561, %v893
        %895 = vmatmul.f32.gmra.mxu0 %v407
        %v896 = vpop.f32.mrf.mxu0
        %v897 = vadd.f32 %v566, %v896
        %898 = vmatmul.f32.gmra.mxu0 %v410
        %v899 = vpop.f32.mrf.mxu0
        %v900 = vadd.f32 %v571, %v899
        %901 = vmatmul.f32.gmra.mxu0 %v413
        %v902 = vpop.f32.mrf.mxu0
        %v903 = vadd.f32 %v576, %v902
        %904 = vmatmul.f32.gmra.mxu0 %v416
        %v905 = vpop.f32.mrf.mxu0
        %v906 = vadd.f32 %v581, %v905
        %907 = vmatmul.f32.gmra.mxu0 %v419
        %v908 = vpop.f32.mrf.mxu0
        %v909 = vadd.f32 %v586, %v908
        %910 = vmatmul.f32.gmra.mxu0 %v422
        %v911 = vpop.f32.mrf.mxu0
        %v912 = vadd.f32 %v591, %v911
        %913 = vmatmul.f32.gmra.mxu0 %v425
        %v914 = vpop.f32.mrf.mxu0
        %v915 = vadd.f32 %v596, %v914
        %916 = vmatmul.f32.gmra.mxu0 %v428
        %v917 = vpop.f32.mrf.mxu0
        %v918 = vadd.f32 %v601, %v917
        %919 = vmatmul.f32.gmra.mxu0 %v431
        %v920 = vpop.f32.mrf.mxu0
        %v921 = vadd.f32 %v606, %v920
        %922 = vmatmul.f32.gmra.mxu0 %v434
        %v923 = vpop.f32.mrf.mxu0
        %v924 = vadd.f32 %v611, %v923
        %925 = vmatmul.f32.gmra.mxu0 %v437
        %v926 = vpop.f32.mrf.mxu0
        %v927 = vadd.f32 %v616, %v926
        %928 = vmatmul.f32.gmra.mxu0 %v440
        %v929 = vpop.f32.mrf.mxu0
        %v930 = vadd.f32 %v621, %v929
        %931 = vdwg.mxu0
        %932 = vmatpush.msra.mxu0 %v506
        %933 = vmatpush.msra.mxu0 %v504
        %934 = vmatpush.msra.mxu0 %v502
        %935 = vmatpush.msra.mxu0 %v500
        %936 = vmatpush.msra.mxu0 %v498
        %937 = vmatpush.msra.mxu0 %v496
        %938 = vmatpush.msra.mxu0 %v494
        %939 = vmatpush.msra.mxu0 %v492
        %940 = vmatpush.msra.mxu0 %v490
        %941 = vmatpush.msra.mxu0 %v488
        %942 = vmatpush.msra.mxu0 %v486
        %943 = vmatpush.msra.mxu0 %v484
        %944 = vmatpush.msra.mxu0 %v482
        %945 = vmatpush.msra.mxu0 %v480
        %946 = vmatpush.msra.mxu0 %v478
        %947 = vmatpush.msra.mxu0 %v476
        %948 = vmatmul.f32.gmra.mxu0 %v396
        %v949 = vpop.f32.mrf.mxu0
        %v950 = vadd.f32 %v885, %v949
        %951 = vmatmul.f32.gmra.mxu0 %v399
        %v952 = vpop.f32.mrf.mxu0
        %v953 = vadd.f32 %v888, %v952
        %954 = vmatmul.f32.gmra.mxu0 %v402
        %v955 = vpop.f32.mrf.mxu0
        %v956 = vadd.f32 %v891, %v955
        %957 = vmatmul.f32.gmra.mxu0 %v405
        %v958 = vpop.f32.mrf.mxu0
        %v959 = vadd.f32 %v894, %v958
        %960 = vmatmul.f32.gmra.mxu0 %v408
        %v961 = vpop.f32.mrf.mxu0
        %v962 = vadd.f32 %v897, %v961
        %963 = vmatmul.f32.gmra.mxu0 %v411
        %v964 = vpop.f32.mrf.mxu0
        %v965 = vadd.f32 %v900, %v964
        %966 = vmatmul.f32.gmra.mxu0 %v414
        %v967 = vpop.f32.mrf.mxu0
        %v968 = vadd.f32 %v903, %v967
        %969 = vmatmul.f32.gmra.mxu0 %v417
        %v970 = vpop.f32.mrf.mxu0
        %v971 = vadd.f32 %v906, %v970
        %972 = vmatmul.f32.gmra.mxu0 %v420
        %v973 = vpop.f32.mrf.mxu0
        %v974 = vadd.f32 %v909, %v973
        %975 = vmatmul.f32.gmra.mxu0 %v423
        %v976 = vpop.f32.mrf.mxu0
        %v977 = vadd.f32 %v912, %v976
        %978 = vmatmul.f32.gmra.mxu0 %v426
        %v979 = vpop.f32.mrf.mxu0
        %v980 = vadd.f32 %v915, %v979
        %981 = vmatmul.f32.gmra.mxu0 %v429
        %v982 = vpop.f32.mrf.mxu0
        %v983 = vadd.f32 %v918, %v982
        %984 = vmatmul.f32.gmra.mxu0 %v432
        %v985 = vpop.f32.mrf.mxu0
        %v986 = vadd.f32 %v921, %v985
        %987 = vmatmul.f32.gmra.mxu0 %v435
        %v988 = vpop.f32.mrf.mxu0
        %v989 = vadd.f32 %v924, %v988
        %990 = vmatmul.f32.gmra.mxu0 %v438
        %v991 = vpop.f32.mrf.mxu0
        %v992 = vadd.f32 %v927, %v991
        %993 = vmatmul.f32.gmra.mxu0 %v441
        %v994 = vpop.f32.mrf.mxu0
        %v995 = vadd.f32 %v930, %v994
        %996 = vdwg.mxu0
        %997 = vmatpush.msra.mxu0 0.0
        %998 = vmatpush.msra.mxu0 0.0
        %999 = vmatpush.msra.mxu0 0.0
        %1000 = vmatpush.msra.mxu0 0.0
        %1001 = vmatpush.msra.mxu0 0.0
        %1002 = vmatpush.msra.mxu0 0.0
        %1003 = vmatpush.msra.mxu0 %v526
        %1004 = vmatpush.msra.mxu0 %v524
        %1005 = vmatpush.msra.mxu0 %v522
        %1006 = vmatpush.msra.mxu0 %v520
        %1007 = vmatpush.msra.mxu0 %v518
        %1008 = vmatpush.msra.mxu0 %v516
        %1009 = vmatpush.msra.mxu0 %v514
        %1010 = vmatpush.msra.mxu0 %v512
        %1011 = vmatpush.msra.mxu0 %v510
        %1012 = vmatpush.msra.mxu0 %v508
        %1013 = vmatmul.f32.gmra.mxu0 %v625
        %v1014 = vpop.f32.mrf.mxu0
        %v1015 = vadd.f32 %v950, %v1014
        %1016 = vmatmul.f32.gmra.mxu0 %v628
        %v1017 = vpop.f32.mrf.mxu0
        %v1018 = vadd.f32 %v953, %v1017
        %1019 = vmatmul.f32.gmra.mxu0 %v631
        %v1020 = vpop.f32.mrf.mxu0
        %v1021 = vadd.f32 %v956, %v1020
        %1022 = vmatmul.f32.gmra.mxu0 %v634
        %v1023 = vpop.f32.mrf.mxu0
        %v1024 = vadd.f32 %v959, %v1023
        %1025 = vmatmul.f32.gmra.mxu0 %v637
        %v1026 = vpop.f32.mrf.mxu0
        %v1027 = vadd.f32 %v962, %v1026
        %1028 = vmatmul.f32.gmra.mxu0 %v640
        %v1029 = vpop.f32.mrf.mxu0
        %v1030 = vadd.f32 %v965, %v1029
        %1031 = vmatmul.f32.gmra.mxu0 %v643
        %v1032 = vpop.f32.mrf.mxu0
        %v1033 = vadd.f32 %v968, %v1032
        %1034 = vmatmul.f32.gmra.mxu0 %v646
        %v1035 = vpop.f32.mrf.mxu0
        %v1036 = vadd.f32 %v971, %v1035
        %1037 = vmatmul.f32.gmra.mxu0 %v649
        %v1038 = vpop.f32.mrf.mxu0
        %v1039 = vadd.f32 %v974, %v1038
        %1040 = vmatmul.f32.gmra.mxu0 %v652
        %v1041 = vpop.f32.mrf.mxu0
        %v1042 = vadd.f32 %v977, %v1041
        %1043 = vmatmul.f32.gmra.mxu0 %v655
        %v1044 = vpop.f32.mrf.mxu0
        %v1045 = vadd.f32 %v980, %v1044
        %1046 = vmatmul.f32.gmra.mxu0 %v658
        %v1047 = vpop.f32.mrf.mxu0
        %v1048 = vadd.f32 %v983, %v1047
        %1049 = vmatmul.f32.gmra.mxu0 %v661
        %v1050 = vpop.f32.mrf.mxu0
        %v1051 = vadd.f32 %v986, %v1050
        %1052 = vmatmul.f32.gmra.mxu0 %v664
        %v1053 = vpop.f32.mrf.mxu0
        %v1054 = vadd.f32 %v989, %v1053
        %1055 = vmatmul.f32.gmra.mxu0 %v667
        %v1056 = vpop.f32.mrf.mxu0
        %v1057 = vadd.f32 %v992, %v1056
        %1058 = vmatmul.f32.gmra.mxu0 %v670
        %v1059 = vpop.f32.mrf.mxu0
        %v1060 = vadd.f32 %v995, %v1059
        %1061 = vdwg.mxu0
        %v1062 = vld [vmem:[%s350] sm:$0xff]
        %v1063 = vld [vmem:[%s350 + $0x8] sm:$0xff]
        %v1064 = vld [vmem:[%s350 + $0x10] sm:$0xff]
        %v1065 = vld [vmem:[%s350 + $0x18] sm:$0xff]
        %v1066 = vld [vmem:[%s350 + $0x20] sm:$0xff]
        %v1067 = vld [vmem:[%s350 + $0x28] sm:$0xff]
        %v1068 = vld [vmem:[%s350 + $0x30] sm:$0xff]
        %v1069 = vld [vmem:[%s350 + $0x38] sm:$0xff]
        %v1070 = vld [vmem:[%s4] sm:$0xff]
        %v1071 = vld [vmem:[%s4 + $0x8] sm:$0xff]
        %v1072 = vld [vmem:[%s4 + $0x10] sm:$0xff]
        %v1073 = vld [vmem:[%s4 + $0x18] sm:$0xff]
        %v1074 = vld [vmem:[%s4 + $0x20] sm:$0xff]
        %v1075 = vld [vmem:[%s4 + $0x28] sm:$0xff]
        %v1076 = vld [vmem:[%s4 + $0x30] sm:$0xff]
        %v1077 = vld [vmem:[%s4 + $0x38] sm:$0xff]
        %v1078 = vmul.f32 %v1062, %v1070
        %v1079 = vmul.f32 %v1063, %v1071
        %v1080 = vmul.f32 %v1064, %v1072
        %v1081 = vmul.f32 %v1065, %v1073
        %v1082 = vmul.f32 %v1066, %v1074
        %v1083 = vmul.f32 %v1067, %v1075
        %v1084 = vmul.f32 %v1068, %v1076
        %v1085 = vmul.f32 %v1069, %v1077
        %v1086 = vadd.f32 %v820, %v1078
        %v1087 = vadd.f32 %v1015, %v1079
        %v1088 = vadd.f32 %v823, %v1080
        %v1089 = vadd.f32 %v1018, %v1081
        %v1090 = vadd.f32 %v826, %v1082
        %v1091 = vadd.f32 %v1021, %v1083
        %v1092 = vadd.f32 %v829, %v1084
        %v1093 = vadd.f32 %v1024, %v1085
        %v1094 = vxor.u32 %v1086, 2147483648
        %v1095 = vxor.u32 %v1087, 2147483648
        %v1096 = vxor.u32 %v1088, 2147483648
        %v1097 = vxor.u32 %v1089, 2147483648
        %v1098 = vxor.u32 %v1090, 2147483648
        %v1099 = vxor.u32 %v1091, 2147483648
        %v1100 = vxor.u32 %v1092, 2147483648
        %v1101 = vxor.u32 %v1093, 2147483648
        %v1102 = vmul.f32 %v1094, 1.442695
        %v1103 = vpow.pop %v1102
        %v1104 = vmul.f32 %v1095, 1.442695
        %v1105 = vpow.pop %v1104
        %v1106 = vmul.f32 %v1096, 1.442695
        %v1107 = vpow.pop %v1106
        %v1108 = vmul.f32 %v1097, 1.442695
        %v1109 = vpow.pop %v1108
        %v1110 = vmul.f32 %v1098, 1.442695
        %v1111 = vpow.pop %v1110
        %v1112 = vmul.f32 %v1099, 1.442695
        %v1113 = vpow.pop %v1112
        %v1114 = vmul.f32 %v1100, 1.442695
        %v1115 = vpow.pop %v1114
        %v1116 = vmul.f32 %v1101, 1.442695
        %v1117 = vpow.pop %v1116
        %v1118 = vadd.f32 %v1103, 1.0
        %v1119 = vadd.f32 %v1105, 1.0
        %v1120 = vadd.f32 %v1107, 1.0
        %v1121 = vadd.f32 %v1109, 1.0
        %v1122 = vadd.f32 %v1111, 1.0
        %v1123 = vadd.f32 %v1113, 1.0
        %v1124 = vadd.f32 %v1115, 1.0
        %v1125 = vadd.f32 %v1117, 1.0
        %v1126 = vrcp.pop %v1118
        %v1127 = vmul.f32 %v1118, %v1126
        %v1128 = vsub.f32 1.0, %v1127
        %v1129 = vmul.f32 %v1126, %v1128
        %v1130 = vadd.f32 %v1126, %v1129
        %vm1131 = vweird.f32 %v1118
        %vm1132 = vweird.f32 %v1126
        %vm1133 = vmor %vm1131, %vm1132
        %v1134 = vsel %vm1133, %v1126, %v1130
        %v1135 = vand.u32 2147483647, %v1118
        %vm1136 = vcmp.eq.f32.partialorder %v1135, 8.507059e+37
        %v1137 = vand.u32 %v1118, 2147483648
        %v1138 = vor.u32 1.1754944e-38, %v1137
        %v1139 = vsel %vm1136, %v1138, %v1134
        %v1140 = vmul.f32 1.0, %v1139
        %v1141 = vrcp.pop %v1119
        %v1142 = vmul.f32 %v1119, %v1141
        %v1143 = vsub.f32 1.0, %v1142
        %v1144 = vmul.f32 %v1141, %v1143
        %v1145 = vadd.f32 %v1141, %v1144
        %vm1146 = vweird.f32 %v1119
        %vm1147 = vweird.f32 %v1141
        %vm1148 = vmor %vm1146, %vm1147
        %v1149 = vsel %vm1148, %v1141, %v1145
        %v1150 = vand.u32 2147483647, %v1119
        %vm1151 = vcmp.eq.f32.partialorder %v1150, 8.507059e+37
        %v1152 = vand.u32 %v1119, 2147483648
        %v1153 = vor.u32 1.1754944e-38, %v1152
        %v1154 = vsel %vm1151, %v1153, %v1149
        %v1155 = vmul.f32 1.0, %v1154
        %v1156 = vrcp.pop %v1120
        %v1157 = vmul.f32 %v1120, %v1156
        %v1158 = vsub.f32 1.0, %v1157
        %v1159 = vmul.f32 %v1156, %v1158
        %v1160 = vadd.f32 %v1156, %v1159
        %vm1161 = vweird.f32 %v1120
        %vm1162 = vweird.f32 %v1156
        %vm1163 = vmor %vm1161, %vm1162
        %v1164 = vsel %vm1163, %v1156, %v1160
        %v1165 = vand.u32 2147483647, %v1120
        %vm1166 = vcmp.eq.f32.partialorder %v1165, 8.507059e+37
        %v1167 = vand.u32 %v1120, 2147483648
        %v1168 = vor.u32 1.1754944e-38, %v1167
        %v1169 = vsel %vm1166, %v1168, %v1164
        %v1170 = vmul.f32 1.0, %v1169
        %v1171 = vrcp.pop %v1121
        %v1172 = vmul.f32 %v1121, %v1171
        %v1173 = vsub.f32 1.0, %v1172
        %v1174 = vmul.f32 %v1171, %v1173
        %v1175 = vadd.f32 %v1171, %v1174
        %vm1176 = vweird.f32 %v1121
        %vm1177 = vweird.f32 %v1171
        %vm1178 = vmor %vm1176, %vm1177
        %v1179 = vsel %vm1178, %v1171, %v1175
        %v1180 = vand.u32 2147483647, %v1121
        %vm1181 = vcmp.eq.f32.partialorder %v1180, 8.507059e+37
        %v1182 = vand.u32 %v1121, 2147483648
        %v1183 = vor.u32 1.1754944e-38, %v1182
        %v1184 = vsel %vm1181, %v1183, %v1179
        %v1185 = vmul.f32 1.0, %v1184
        %v1186 = vrcp.pop %v1122
        %v1187 = vmul.f32 %v1122, %v1186
        %v1188 = vsub.f32 1.0, %v1187
        %v1189 = vmul.f32 %v1186, %v1188
        %v1190 = vadd.f32 %v1186, %v1189
        %vm1191 = vweird.f32 %v1122
        %vm1192 = vweird.f32 %v1186
        %vm1193 = vmor %vm1191, %vm1192
        %v1194 = vsel %vm1193, %v1186, %v1190
        %v1195 = vand.u32 2147483647, %v1122
        %vm1196 = vcmp.eq.f32.partialorder %v1195, 8.507059e+37
        %v1197 = vand.u32 %v1122, 2147483648
        %v1198 = vor.u32 1.1754944e-38, %v1197
        %v1199 = vsel %vm1196, %v1198, %v1194
        %v1200 = vmul.f32 1.0, %v1199
        %v1201 = vrcp.pop %v1123
        %v1202 = vmul.f32 %v1123, %v1201
        %v1203 = vsub.f32 1.0, %v1202
        %v1204 = vmul.f32 %v1201, %v1203
        %v1205 = vadd.f32 %v1201, %v1204
        %vm1206 = vweird.f32 %v1123
        %vm1207 = vweird.f32 %v1201
        %vm1208 = vmor %vm1206, %vm1207
        %v1209 = vsel %vm1208, %v1201, %v1205
        %v1210 = vand.u32 2147483647, %v1123
        %vm1211 = vcmp.eq.f32.partialorder %v1210, 8.507059e+37
        %v1212 = vand.u32 %v1123, 2147483648
        %v1213 = vor.u32 1.1754944e-38, %v1212
        %v1214 = vsel %vm1211, %v1213, %v1209
        %v1215 = vmul.f32 1.0, %v1214
        %v1216 = vrcp.pop %v1124
        %v1217 = vmul.f32 %v1124, %v1216
        %v1218 = vsub.f32 1.0, %v1217
        %v1219 = vmul.f32 %v1216, %v1218
        %v1220 = vadd.f32 %v1216, %v1219
        %vm1221 = vweird.f32 %v1124
        %vm1222 = vweird.f32 %v1216
        %vm1223 = vmor %vm1221, %vm1222
        %v1224 = vsel %vm1223, %v1216, %v1220
        %v1225 = vand.u32 2147483647, %v1124
        %vm1226 = vcmp.eq.f32.partialorder %v1225, 8.507059e+37
        %v1227 = vand.u32 %v1124, 2147483648
        %v1228 = vor.u32 1.1754944e-38, %v1227
        %v1229 = vsel %vm1226, %v1228, %v1224
        %v1230 = vmul.f32 1.0, %v1229
        %v1231 = vrcp.pop %v1125
        %v1232 = vmul.f32 %v1125, %v1231
        %v1233 = vsub.f32 1.0, %v1232
        %v1234 = vmul.f32 %v1231, %v1233
        %v1235 = vadd.f32 %v1231, %v1234
        %vm1236 = vweird.f32 %v1125
        %vm1237 = vweird.f32 %v1231
        %vm1238 = vmor %vm1236, %vm1237
        %v1239 = vsel %vm1238, %v1231, %v1235
        %v1240 = vand.u32 2147483647, %v1125
        %vm1241 = vcmp.eq.f32.partialorder %v1240, 8.507059e+37
        %v1242 = vand.u32 %v1125, 2147483648
        %v1243 = vor.u32 1.1754944e-38, %v1242
        %v1244 = vsel %vm1241, %v1243, %v1239
        %v1245 = vmul.f32 1.0, %v1244
        %v1246 = vld [vmem:[%s5] sm:$0xff]
        %v1247 = vld [vmem:[%s5 + $0x8] sm:$0xff]
        %v1248 = vld [vmem:[%s5 + $0x10] sm:$0xff]
        %v1249 = vld [vmem:[%s5 + $0x18] sm:$0xff]
        %v1250 = vld [vmem:[%s5 + $0x20] sm:$0xff]
        %v1251 = vld [vmem:[%s5 + $0x28] sm:$0xff]
        %v1252 = vld [vmem:[%s5 + $0x30] sm:$0xff]
        %v1253 = vld [vmem:[%s5 + $0x38] sm:$0xff]
        %v1254 = vmul.f32 %v1062, %v1246
        %v1255 = vmul.f32 %v1063, %v1247
        %v1256 = vmul.f32 %v1064, %v1248
        %v1257 = vmul.f32 %v1065, %v1249
        %v1258 = vmul.f32 %v1066, %v1250
        %v1259 = vmul.f32 %v1067, %v1251
        %v1260 = vmul.f32 %v1068, %v1252
        %v1261 = vmul.f32 %v1069, %v1253
        %v1262 = vadd.f32 %v832, %v1254
        %v1263 = vadd.f32 %v1027, %v1255
        %v1264 = vadd.f32 %v835, %v1256
        %v1265 = vadd.f32 %v1030, %v1257
        %v1266 = vadd.f32 %v838, %v1258
        %v1267 = vadd.f32 %v1033, %v1259
        %v1268 = vadd.f32 %v841, %v1260
        %v1269 = vadd.f32 %v1036, %v1261
        %v1270 = vxor.u32 %v1262, 2147483648
        %v1271 = vxor.u32 %v1263, 2147483648
        %v1272 = vxor.u32 %v1264, 2147483648
        %v1273 = vxor.u32 %v1265, 2147483648
        %v1274 = vxor.u32 %v1266, 2147483648
        %v1275 = vxor.u32 %v1267, 2147483648
        %v1276 = vxor.u32 %v1268, 2147483648
        %v1277 = vxor.u32 %v1269, 2147483648
        %v1278 = vmul.f32 %v1270, 1.442695
        %v1279 = vpow.pop %v1278
        %v1280 = vmul.f32 %v1271, 1.442695
        %v1281 = vpow.pop %v1280
        %v1282 = vmul.f32 %v1272, 1.442695
        %v1283 = vpow.pop %v1282
        %v1284 = vmul.f32 %v1273, 1.442695
        %v1285 = vpow.pop %v1284
        %v1286 = vmul.f32 %v1274, 1.442695
        %v1287 = vpow.pop %v1286
        %v1288 = vmul.f32 %v1275, 1.442695
        %v1289 = vpow.pop %v1288
        %v1290 = vmul.f32 %v1276, 1.442695
        %v1291 = vpow.pop %v1290
        %v1292 = vmul.f32 %v1277, 1.442695
        %v1293 = vpow.pop %v1292
        %v1294 = vadd.f32 %v1279, 1.0
        %v1295 = vadd.f32 %v1281, 1.0
        %v1296 = vadd.f32 %v1283, 1.0
        %v1297 = vadd.f32 %v1285, 1.0
        %v1298 = vadd.f32 %v1287, 1.0
        %v1299 = vadd.f32 %v1289, 1.0
        %v1300 = vadd.f32 %v1291, 1.0
        %v1301 = vadd.f32 %v1293, 1.0
        %v1302 = vrcp.pop %v1294
        %v1303 = vmul.f32 %v1294, %v1302
        %v1304 = vsub.f32 1.0, %v1303
        %v1305 = vmul.f32 %v1302, %v1304
        %v1306 = vadd.f32 %v1302, %v1305
        %vm1307 = vweird.f32 %v1294
        %vm1308 = vweird.f32 %v1302
        %vm1309 = vmor %vm1307, %vm1308
        %v1310 = vsel %vm1309, %v1302, %v1306
        %v1311 = vand.u32 2147483647, %v1294
        %vm1312 = vcmp.eq.f32.partialorder %v1311, 8.507059e+37
        %v1313 = vand.u32 %v1294, 2147483648
        %v1314 = vor.u32 1.1754944e-38, %v1313
        %v1315 = vsel %vm1312, %v1314, %v1310
        %v1316 = vmul.f32 1.0, %v1315
        %v1317 = vrcp.pop %v1295
        %v1318 = vmul.f32 %v1295, %v1317
        %v1319 = vsub.f32 1.0, %v1318
        %v1320 = vmul.f32 %v1317, %v1319
        %v1321 = vadd.f32 %v1317, %v1320
        %vm1322 = vweird.f32 %v1295
        %vm1323 = vweird.f32 %v1317
        %vm1324 = vmor %vm1322, %vm1323
        %v1325 = vsel %vm1324, %v1317, %v1321
        %v1326 = vand.u32 2147483647, %v1295
        %vm1327 = vcmp.eq.f32.partialorder %v1326, 8.507059e+37
        %v1328 = vand.u32 %v1295, 2147483648
        %v1329 = vor.u32 1.1754944e-38, %v1328
        %v1330 = vsel %vm1327, %v1329, %v1325
        %v1331 = vmul.f32 1.0, %v1330
        %v1332 = vrcp.pop %v1296
        %v1333 = vmul.f32 %v1296, %v1332
        %v1334 = vsub.f32 1.0, %v1333
        %v1335 = vmul.f32 %v1332, %v1334
        %v1336 = vadd.f32 %v1332, %v1335
        %vm1337 = vweird.f32 %v1296
        %vm1338 = vweird.f32 %v1332
        %vm1339 = vmor %vm1337, %vm1338
        %v1340 = vsel %vm1339, %v1332, %v1336
        %v1341 = vand.u32 2147483647, %v1296
        %vm1342 = vcmp.eq.f32.partialorder %v1341, 8.507059e+37
        %v1343 = vand.u32 %v1296, 2147483648
        %v1344 = vor.u32 1.1754944e-38, %v1343
        %v1345 = vsel %vm1342, %v1344, %v1340
        %v1346 = vmul.f32 1.0, %v1345
        %v1347 = vrcp.pop %v1297
        %v1348 = vmul.f32 %v1297, %v1347
        %v1349 = vsub.f32 1.0, %v1348
        %v1350 = vmul.f32 %v1347, %v1349
        %v1351 = vadd.f32 %v1347, %v1350
        %vm1352 = vweird.f32 %v1297
        %vm1353 = vweird.f32 %v1347
        %vm1354 = vmor %vm1352, %vm1353
        %v1355 = vsel %vm1354, %v1347, %v1351
        %v1356 = vand.u32 2147483647, %v1297
        %vm1357 = vcmp.eq.f32.partialorder %v1356, 8.507059e+37
        %v1358 = vand.u32 %v1297, 2147483648
        %v1359 = vor.u32 1.1754944e-38, %v1358
        %v1360 = vsel %vm1357, %v1359, %v1355
        %v1361 = vmul.f32 1.0, %v1360
        %v1362 = vrcp.pop %v1298
        %v1363 = vmul.f32 %v1298, %v1362
        %v1364 = vsub.f32 1.0, %v1363
        %v1365 = vmul.f32 %v1362, %v1364
        %v1366 = vadd.f32 %v1362, %v1365
        %vm1367 = vweird.f32 %v1298
        %vm1368 = vweird.f32 %v1362
        %vm1369 = vmor %vm1367, %vm1368
        %v1370 = vsel %vm1369, %v1362, %v1366
        %v1371 = vand.u32 2147483647, %v1298
        %vm1372 = vcmp.eq.f32.partialorder %v1371, 8.507059e+37
        %v1373 = vand.u32 %v1298, 2147483648
        %v1374 = vor.u32 1.1754944e-38, %v1373
        %v1375 = vsel %vm1372, %v1374, %v1370
        %v1376 = vmul.f32 1.0, %v1375
        %v1377 = vrcp.pop %v1299
        %v1378 = vmul.f32 %v1299, %v1377
        %v1379 = vsub.f32 1.0, %v1378
        %v1380 = vmul.f32 %v1377, %v1379
        %v1381 = vadd.f32 %v1377, %v1380
        %vm1382 = vweird.f32 %v1299
        %vm1383 = vweird.f32 %v1377
        %vm1384 = vmor %vm1382, %vm1383
        %v1385 = vsel %vm1384, %v1377, %v1381
        %v1386 = vand.u32 2147483647, %v1299
        %vm1387 = vcmp.eq.f32.partialorder %v1386, 8.507059e+37
        %v1388 = vand.u32 %v1299, 2147483648
        %v1389 = vor.u32 1.1754944e-38, %v1388
        %v1390 = vsel %vm1387, %v1389, %v1385
        %v1391 = vmul.f32 1.0, %v1390
        %v1392 = vrcp.pop %v1300
        %v1393 = vmul.f32 %v1300, %v1392
        %v1394 = vsub.f32 1.0, %v1393
        %v1395 = vmul.f32 %v1392, %v1394
        %v1396 = vadd.f32 %v1392, %v1395
        %vm1397 = vweird.f32 %v1300
        %vm1398 = vweird.f32 %v1392
        %vm1399 = vmor %vm1397, %vm1398
        %v1400 = vsel %vm1399, %v1392, %v1396
        %v1401 = vand.u32 2147483647, %v1300
        %vm1402 = vcmp.eq.f32.partialorder %v1401, 8.507059e+37
        %v1403 = vand.u32 %v1300, 2147483648
        %v1404 = vor.u32 1.1754944e-38, %v1403
        %v1405 = vsel %vm1402, %v1404, %v1400
        %v1406 = vmul.f32 1.0, %v1405
        %v1407 = vrcp.pop %v1301
        %v1408 = vmul.f32 %v1301, %v1407
        %v1409 = vsub.f32 1.0, %v1408
        %v1410 = vmul.f32 %v1407, %v1409
        %v1411 = vadd.f32 %v1407, %v1410
        %vm1412 = vweird.f32 %v1301
        %vm1413 = vweird.f32 %v1407
        %vm1414 = vmor %vm1412, %vm1413
        %v1415 = vsel %vm1414, %v1407, %v1411
        %v1416 = vand.u32 2147483647, %v1301
        %vm1417 = vcmp.eq.f32.partialorder %v1416, 8.507059e+37
        %v1418 = vand.u32 %v1301, 2147483648
        %v1419 = vor.u32 1.1754944e-38, %v1418
        %v1420 = vsel %vm1417, %v1419, %v1415
        %v1421 = vmul.f32 1.0, %v1420
        %v1422 = vmul.f32 %v1316, %v1062
        %v1423 = vmul.f32 %v1331, %v1063
        %v1424 = vmul.f32 %v1346, %v1064
        %v1425 = vmul.f32 %v1361, %v1065
        %v1426 = vmul.f32 %v1376, %v1066
        %v1427 = vmul.f32 %v1391, %v1067
        %v1428 = vmul.f32 %v1406, %v1068
        %v1429 = vmul.f32 %v1421, %v1069
        %v1430 = vtanh.pop %v844
        %v1431 = vtanh.pop %v1039
        %v1432 = vtanh.pop %v847
        %v1433 = vtanh.pop %v1042
        %v1434 = vtanh.pop %v850
        %v1435 = vtanh.pop %v1045
        %v1436 = vtanh.pop %v853
        %v1437 = vtanh.pop %v1048
        %v1438 = vmul.f32 %v1140, %v1430
        %v1439 = vmul.f32 %v1155, %v1431
        %v1440 = vmul.f32 %v1170, %v1432
        %v1441 = vmul.f32 %v1185, %v1433
        %v1442 = vmul.f32 %v1200, %v1434
        %v1443 = vmul.f32 %v1215, %v1435
        %v1444 = vmul.f32 %v1230, %v1436
        %v1445 = vmul.f32 %v1245, %v1437
        %v1446 = vadd.f32 %v1422, %v1438
        %v1447 = vadd.f32 %v1423, %v1439
        %v1448 = vadd.f32 %v1424, %v1440
        %v1449 = vadd.f32 %v1425, %v1441
        %v1450 = vadd.f32 %v1426, %v1442
        %v1451 = vadd.f32 %v1427, %v1443
        %v1452 = vadd.f32 %v1428, %v1444
        %v1453 = vadd.f32 %v1429, %v1445
        %v1454 = vld [vmem:[%s6] sm:$0xff]
        %v1455 = vld [vmem:[%s6 + $0x8] sm:$0xff]
        %v1456 = vld [vmem:[%s6 + $0x10] sm:$0xff]
        %v1457 = vld [vmem:[%s6 + $0x18] sm:$0xff]
        %v1458 = vld [vmem:[%s6 + $0x20] sm:$0xff]
        %v1459 = vld [vmem:[%s6 + $0x28] sm:$0xff]
        %v1460 = vld [vmem:[%s6 + $0x30] sm:$0xff]
        %v1461 = vld [vmem:[%s6 + $0x38] sm:$0xff]
        %v1462 = vmul.f32 %v1446, %v1454
        %v1463 = vmul.f32 %v1447, %v1455
        %v1464 = vmul.f32 %v1448, %v1456
        %v1465 = vmul.f32 %v1449, %v1457
        %v1466 = vmul.f32 %v1450, %v1458
        %v1467 = vmul.f32 %v1451, %v1459
        %v1468 = vmul.f32 %v1452, %v1460
        %v1469 = vmul.f32 %v1453, %v1461
        %v1470 = vadd.f32 %v856, %v1462
        %v1471 = vadd.f32 %v1051, %v1463
        %v1472 = vadd.f32 %v859, %v1464
        %v1473 = vadd.f32 %v1054, %v1465
        %v1474 = vadd.f32 %v862, %v1466
        %v1475 = vadd.f32 %v1057, %v1467
        %v1476 = vadd.f32 %v865, %v1468
        %v1477 = vadd.f32 %v1060, %v1469
        %v1478 = vxor.u32 %v1470, 2147483648
        %v1479 = vxor.u32 %v1471, 2147483648
        %v1480 = vxor.u32 %v1472, 2147483648
        %v1481 = vxor.u32 %v1473, 2147483648
        %v1482 = vxor.u32 %v1474, 2147483648
        %v1483 = vxor.u32 %v1475, 2147483648
        %v1484 = vxor.u32 %v1476, 2147483648
        %v1485 = vxor.u32 %v1477, 2147483648
        %v1486 = vmul.f32 %v1478, 1.442695
        %v1487 = vpow.pop %v1486
        %v1488 = vmul.f32 %v1479, 1.442695
        %v1489 = vpow.pop %v1488
        %v1490 = vmul.f32 %v1480, 1.442695
        %v1491 = vpow.pop %v1490
        %v1492 = vmul.f32 %v1481, 1.442695
        %v1493 = vpow.pop %v1492
        %v1494 = vmul.f32 %v1482, 1.442695
        %v1495 = vpow.pop %v1494
        %v1496 = vmul.f32 %v1483, 1.442695
        %v1497 = vpow.pop %v1496
        %v1498 = vmul.f32 %v1484, 1.442695
        %v1499 = vpow.pop %v1498
        %v1500 = vmul.f32 %v1485, 1.442695
        %v1501 = vpow.pop %v1500
        %v1502 = vadd.f32 %v1487, 1.0
        %v1503 = vadd.f32 %v1489, 1.0
        %v1504 = vadd.f32 %v1491, 1.0
        %v1505 = vadd.f32 %v1493, 1.0
        %v1506 = vadd.f32 %v1495, 1.0
        %v1507 = vadd.f32 %v1497, 1.0
        %v1508 = vadd.f32 %v1499, 1.0
        %v1509 = vadd.f32 %v1501, 1.0
        %v1510 = vrcp.pop %v1502
        %v1511 = vmul.f32 %v1502, %v1510
        %v1512 = vsub.f32 1.0, %v1511
        %v1513 = vmul.f32 %v1510, %v1512
        %v1514 = vadd.f32 %v1510, %v1513
        %vm1515 = vweird.f32 %v1502
        %vm1516 = vweird.f32 %v1510
        %vm1517 = vmor %vm1515, %vm1516
        %v1518 = vsel %vm1517, %v1510, %v1514
        %v1519 = vand.u32 2147483647, %v1502
        %vm1520 = vcmp.eq.f32.partialorder %v1519, 8.507059e+37
        %v1521 = vand.u32 %v1502, 2147483648
        %v1522 = vor.u32 1.1754944e-38, %v1521
        %v1523 = vsel %vm1520, %v1522, %v1518
        %v1524 = vmul.f32 1.0, %v1523
        %v1525 = vrcp.pop %v1503
        %v1526 = vmul.f32 %v1503, %v1525
        %v1527 = vsub.f32 1.0, %v1526
        %v1528 = vmul.f32 %v1525, %v1527
        %v1529 = vadd.f32 %v1525, %v1528
        %vm1530 = vweird.f32 %v1503
        %vm1531 = vweird.f32 %v1525
        %vm1532 = vmor %vm1530, %vm1531
        %v1533 = vsel %vm1532, %v1525, %v1529
        %v1534 = vand.u32 2147483647, %v1503
        %vm1535 = vcmp.eq.f32.partialorder %v1534, 8.507059e+37
        %v1536 = vand.u32 %v1503, 2147483648
        %v1537 = vor.u32 1.1754944e-38, %v1536
        %v1538 = vsel %vm1535, %v1537, %v1533
        %v1539 = vmul.f32 1.0, %v1538
        %v1540 = vrcp.pop %v1504
        %v1541 = vmul.f32 %v1504, %v1540
        %v1542 = vsub.f32 1.0, %v1541
        %v1543 = vmul.f32 %v1540, %v1542
        %v1544 = vadd.f32 %v1540, %v1543
        %vm1545 = vweird.f32 %v1504
        %vm1546 = vweird.f32 %v1540
        %vm1547 = vmor %vm1545, %vm1546
        %v1548 = vsel %vm1547, %v1540, %v1544
        %v1549 = vand.u32 2147483647, %v1504
        %vm1550 = vcmp.eq.f32.partialorder %v1549, 8.507059e+37
        %v1551 = vand.u32 %v1504, 2147483648
        %v1552 = vor.u32 1.1754944e-38, %v1551
        %v1553 = vsel %vm1550, %v1552, %v1548
        %v1554 = vmul.f32 1.0, %v1553
        %v1555 = vrcp.pop %v1505
        %v1556 = vmul.f32 %v1505, %v1555
        %v1557 = vsub.f32 1.0, %v1556
        %v1558 = vmul.f32 %v1555, %v1557
        %v1559 = vadd.f32 %v1555, %v1558
        %vm1560 = vweird.f32 %v1505
        %vm1561 = vweird.f32 %v1555
        %vm1562 = vmor %vm1560, %vm1561
        %v1563 = vsel %vm1562, %v1555, %v1559
        %v1564 = vand.u32 2147483647, %v1505
        %vm1565 = vcmp.eq.f32.partialorder %v1564, 8.507059e+37
        %v1566 = vand.u32 %v1505, 2147483648
        %v1567 = vor.u32 1.1754944e-38, %v1566
        %v1568 = vsel %vm1565, %v1567, %v1563
        %v1569 = vmul.f32 1.0, %v1568
        %v1570 = vrcp.pop %v1506
        %v1571 = vmul.f32 %v1506, %v1570
        %v1572 = vsub.f32 1.0, %v1571
        %v1573 = vmul.f32 %v1570, %v1572
        %v1574 = vadd.f32 %v1570, %v1573
        %vm1575 = vweird.f32 %v1506
        %vm1576 = vweird.f32 %v1570
        %vm1577 = vmor %vm1575, %vm1576
        %v1578 = vsel %vm1577, %v1570, %v1574
        %v1579 = vand.u32 2147483647, %v1506
        %vm1580 = vcmp.eq.f32.partialorder %v1579, 8.507059e+37
        %v1581 = vand.u32 %v1506, 2147483648
        %v1582 = vor.u32 1.1754944e-38, %v1581
        %v1583 = vsel %vm1580, %v1582, %v1578
        %v1584 = vmul.f32 1.0, %v1583
        %v1585 = vrcp.pop %v1507
        %v1586 = vmul.f32 %v1507, %v1585
        %v1587 = vsub.f32 1.0, %v1586
        %v1588 = vmul.f32 %v1585, %v1587
        %v1589 = vadd.f32 %v1585, %v1588
        %vm1590 = vweird.f32 %v1507
        %vm1591 = vweird.f32 %v1585
        %vm1592 = vmor %vm1590, %vm1591
        %v1593 = vsel %vm1592, %v1585, %v1589
        %v1594 = vand.u32 2147483647, %v1507
        %vm1595 = vcmp.eq.f32.partialorder %v1594, 8.507059e+37
        %v1596 = vand.u32 %v1507, 2147483648
        %v1597 = vor.u32 1.1754944e-38, %v1596
        %v1598 = vsel %vm1595, %v1597, %v1593
        %v1599 = vmul.f32 1.0, %v1598
        %v1600 = vrcp.pop %v1508
        %v1601 = vmul.f32 %v1508, %v1600
        %v1602 = vsub.f32 1.0, %v1601
        %v1603 = vmul.f32 %v1600, %v1602
        %v1604 = vadd.f32 %v1600, %v1603
        %vm1605 = vweird.f32 %v1508
        %vm1606 = vweird.f32 %v1600
        %vm1607 = vmor %vm1605, %vm1606
        %v1608 = vsel %vm1607, %v1600, %v1604
        %v1609 = vand.u32 2147483647, %v1508
        %vm1610 = vcmp.eq.f32.partialorder %v1609, 8.507059e+37
        %v1611 = vand.u32 %v1508, 2147483648
        %v1612 = vor.u32 1.1754944e-38, %v1611
        %v1613 = vsel %vm1610, %v1612, %v1608
        %v1614 = vmul.f32 1.0, %v1613
        %v1615 = vrcp.pop %v1509
        %v1616 = vmul.f32 %v1509, %v1615
        %v1617 = vsub.f32 1.0, %v1616
        %v1618 = vmul.f32 %v1615, %v1617
        %v1619 = vadd.f32 %v1615, %v1618
        %vm1620 = vweird.f32 %v1509
        %vm1621 = vweird.f32 %v1615
        %vm1622 = vmor %vm1620, %vm1621
        %v1623 = vsel %vm1622, %v1615, %v1619
        %v1624 = vand.u32 2147483647, %v1509
        %vm1625 = vcmp.eq.f32.partialorder %v1624, 8.507059e+37
        %v1626 = vand.u32 %v1509, 2147483648
        %v1627 = vor.u32 1.1754944e-38, %v1626
        %v1628 = vsel %vm1625, %v1627, %v1623
        %v1629 = vmul.f32 1.0, %v1628
        %v1630 = vtanh.pop %v1446
        %v1631 = vtanh.pop %v1447
        %v1632 = vtanh.pop %v1448
        %v1633 = vtanh.pop %v1449
        %v1634 = vtanh.pop %v1450
        %v1635 = vtanh.pop %v1451
        %v1636 = vtanh.pop %v1452
        %v1637 = vtanh.pop %v1453
        %v1638 = vmul.f32 %v1524, %v1630
        %v1639 = vmul.f32 %v1539, %v1631
        %v1640 = vmul.f32 %v1554, %v1632
        %v1641 = vmul.f32 %v1569, %v1633
        %v1642 = vmul.f32 %v1584, %v1634
        %v1643 = vmul.f32 %v1599, %v1635
        %v1644 = vmul.f32 %v1614, %v1636
        %v1645 = vmul.f32 %v1629, %v1637
        %1646 = vst [vmem:[%s383] sm:$0xff] %v1638
        %1647 = vst [vmem:[%s383 + $0x8] sm:$0xff] %v1639
        %1648 = vst [vmem:[%s383 + $0x10] sm:$0xff] %v1640
        %1649 = vst [vmem:[%s383 + $0x18] sm:$0xff] %v1641
        %1650 = vst [vmem:[%s383 + $0x20] sm:$0xff] %v1642
        %1651 = vst [vmem:[%s383 + $0x28] sm:$0xff] %v1643
        %1652 = vst [vmem:[%s383 + $0x30] sm:$0xff] %v1644
        %1653 = vst [vmem:[%s383 + $0x38] sm:$0xff] %v1645
        %1654 = vst [vmem:[%s390] sm:$0xff] %v1446
        %1655 = vst [vmem:[%s390 + $0x8] sm:$0xff] %v1447
        %1656 = vst [vmem:[%s390 + $0x10] sm:$0xff] %v1448
        %1657 = vst [vmem:[%s390 + $0x18] sm:$0xff] %v1449
        %1658 = vst [vmem:[%s390 + $0x20] sm:$0xff] %v1450
        %1659 = vst [vmem:[%s390 + $0x28] sm:$0xff] %v1451
        %1660 = vst [vmem:[%s390 + $0x30] sm:$0xff] %v1452
        %1661 = vst [vmem:[%s390 + $0x38] sm:$0xff] %v1453
        %s1662 = sand.u32 %s194, 1
        %s1663 = scalar_lea.sflag [#allocation4], %s1662
        %s1664 = sand.u32 %s194, 1
        %s1665 = smul.addr %s1664, 64
        %s1666 = scalar_lea.vmem [#allocation6], %s1665
        %s1667 = sand.u32 %s220, 1
        %s1668 = scalar_lea.sflag [#allocation8], %s1667
        %s1669 = sand.u32 %s220, 1
        %s1670 = smul.addr %s1669, 64
        %s1671 = scalar_lea.vmem [#allocation7], %s1670
        // Predicated region
        $region76: #{tpu_custom_call.1} parent=66 // pred_check
          %p1672 = pneg %p204
        $region77: #{tpu_custom_call.1} parent=66 // pred_check_branch
          %1674 = sbr.rel (%p1672) target = $region79
        $region78: #{tpu_custom_call.1} parent=66 // pred_region
          %s1675 = smul.u32 2, %s29
          %1677 = vsyncadd %s1663, 0
          %s1678 = smul.addr %s1675, 8
          %s1679 = scalar_lea.hbm %s7, %s1678
          %s1680 = sshll.u32 %s1666, 4
          %s1681 = int_to_ptr.vmem [resolvable:$true] %s1680
          %s1682 = sshll.u32 %s1679, 4
          %s1683 = int_to_ptr.hbm [resolvable:$true] %s1682
          %1688 = dma.vmem_to_hbm [thread:$0]  %s1681, 1024, %s1683, %s1663, 256, 512, 16
        $region79: #{tpu_custom_call.1} parent=66 // pred_fallthru
          _
        // Predicated region
        $region80: #{tpu_custom_call.1} parent=66 // pred_check
          %p1689 = pneg %p230
        $region81: #{tpu_custom_call.1} parent=66 // pred_check_branch
          %1691 = sbr.rel (%p1689) target = $region83
        $region82: #{tpu_custom_call.1} parent=66 // pred_region
          %s1692 = smul.u32 2, %s29
          %1694 = vsyncadd %s1668, 0
          %s1695 = smul.addr %s1692, 8
          %s1696 = scalar_lea.hbm %s8, %s1695
          %s1697 = sshll.u32 %s1671, 4
          %s1698 = int_to_ptr.vmem [resolvable:$true] %s1697
          %s1699 = sshll.u32 %s1696, 4
          %s1700 = int_to_ptr.hbm [resolvable:$true] %s1699
          %1705 = dma.vmem_to_hbm [thread:$0]  %s1698, 1024, %s1700, %s1668, 256, 512, 16
        $region83: #{tpu_custom_call.1} parent=66 // pred_fallthru
          _
      $region67: #{tpu_custom_call.1} parent=5 // pred_fallthru
        _
      %p1706 = scmp.le.s32.totalorder 2, %s24
      // Predicated region
      $region84: #{tpu_custom_call.1} parent=5 // pred_check
        %p1707 = pneg %p1706
      $region85: #{tpu_custom_call.1} parent=5 // pred_check_branch
        %1709 = sbr.rel (%p1707) target = $region87
      $region86: #{tpu_custom_call.1} parent=5 // pred_region
        %s1710 = ssub.s32 %s24, 2
        // Predicated region
        $region88: #{tpu_custom_call.1} parent=86 // pred_check
          %p1711 = pneg %p210
        $region89: #{tpu_custom_call.1} parent=86 // pred_check_branch
          %1713 = sbr.rel (%p1711) target = $region91
        $region90: #{tpu_custom_call.1} parent=86 // pred_region
          %s1714 = sand.u32 %s195, 1
          %s1715 = scalar_lea.sflag [#allocation4], %s1714
          %s1716 = sand.u32 %s195, 1
          %s1717 = smul.addr %s1716, 64
          %s1718 = scalar_lea.vmem [#allocation6], %s1717
          %1720 = dma.done %s1715, 1024
        $region91: #{tpu_custom_call.1} parent=86 // pred_fallthru
          _
        // Predicated region
        $region92: #{tpu_custom_call.1} parent=86 // pred_check
          %p1721 = pneg %p236
        $region93: #{tpu_custom_call.1} parent=86 // pred_check_branch
          %1723 = sbr.rel (%p1721) target = $region95
        $region94: #{tpu_custom_call.1} parent=86 // pred_region
          %s1724 = sand.u32 %s221, 1
          %s1725 = scalar_lea.sflag [#allocation8], %s1724
          %s1726 = sand.u32 %s221, 1
          %s1727 = smul.addr %s1726, 64
          %s1728 = scalar_lea.vmem [#allocation7], %s1727
          %1730 = dma.done %s1725, 1024
        $region95: #{tpu_custom_call.1} parent=86 // pred_fallthru
          _
      $region87: #{tpu_custom_call.1} parent=5 // pred_fallthru
        _
    $region6: #{tpu_custom_call.1} parent=1 // loop_footer
      %s28 = sadd.s32 1, %s24
    $region7: #{tpu_custom_call.1} parent=1 // loop_footer_branch
      %23 = sbr.rel target = $region3
    $region8: #{tpu_custom_call.1} parent=1 // loop_exit
      _
    %1731 = vsyncpa [#allocation3], 1
    %s1732 = scalar_lea.sflag [#allocation3], 1
    %1733 = vsyncpa %s1732, 1
    %1734 = vsyncpa [#allocation4], 1
    %s1735 = scalar_lea.sflag [#allocation4], 1
    %1736 = vsyncpa %s1735, 1
    %1737 = vsyncpa [#allocation8], 1
    %s1738 = scalar_lea.sflag [#allocation8], 1
    %1739 = vsyncpa %s1738, 1

</llo_original>
